<compile_context>
chip_gen: v7x
topology: tpu7x:2x2x1
jax: 0.10.0
libtpu: 0.0.40
codegen_flags: <defaults>
</compile_context>

<pallas_src>
import functools

import jax
import jax.numpy as jnp
from jax import lax
from jax.experimental import pallas as pl
from jax.experimental.pallas import tpu as pltpu


# ----------------------------------------------------------------------------
# Fused Pallas kernel: all RNN layers (both directions) + final Linear
# ----------------------------------------------------------------------------
def _birnn_kernel(*refs, T, B, H, num_layers):
    """refs = (x_rows, [wih, whh, b] * num_layers, fc_w, fc_b, out).

    x_rows : (T*B, 1)   time-major rows of the input, row t*B + b = x[b, t, 0]
    wih    : (Din, 2H)  [W_ih_fwd^T | W_ih_bwd^T]        (Din=1 or 2H)
    whh    : (2H, 2H)   block-diag([W_hh_fwd^T, W_hh_bwd^T])
    b      : (1, 2H)    [b_ih_f + b_hh_f | b_ih_b + b_hh_b]
    fc_w   : (2H, M), fc_b : (1, M)
    out    : (B, M)
    """
    x_ref = refs[0]
    layer_refs = [(refs[1 + 3 * l], refs[2 + 3 * l], refs[3 + 3 * l])
                  for l in range(num_layers)]
    fcw_ref = refs[1 + 3 * num_layers]
    fcb_ref = refs[2 + 3 * num_layers]
    out_ref = refs[3 + 3 * num_layers]

    def to_steps(xw_rows):
        # xw_rows: (T*B, 2H), time-major rows. At combined step s the fwd
        # direction consumes time s and the bwd direction consumes time T-1-s.
        return [
            jnp.concatenate(
                [xw_rows[s * B:(s + 1) * B, :H],
                 xw_rows[(T - 1 - s) * B:(T - s) * B, H:]],
                axis=-1)
            for s in range(T)
        ]

    # ---- layer 0: hoisted input projection. Din == 1, so x @ W_ih^T is a
    #      plain lane-broadcast multiply (no tiny K=1 matmuls per step). ----
    xw_rows = x_ref[...] * layer_refs[0][0][...] + layer_refs[0][2][...]
    xw_step = to_steps(xw_rows)                          # T x (B, 2H)

    step_hs = None
    for l in range(num_layers):
        whh = layer_refs[l][1][...]                      # (2H, 2H) block-diag
        # Fully-unrolled recurrence: one fused (B,2H)@(2H,2H) MXU matmul +
        # tanh per step covers both directions simultaneously.
        h = None
        step_hs = []
        for s in range(T):
            pre = xw_step[s]
            if h is not None:
                pre = pre + jnp.dot(h, whh, preferred_element_type=jnp.float32)
            h = jnp.tanh(pre)
            step_hs.append(h)                            # [h_s^fwd | h_{T-1-s}^bwd]

        if l + 1 < num_layers:
            # Reassemble the time-ordered (fwd, bwd) features of this layer and
            # hoist the next layer's input projection into ONE matmul. Only a
            # single lane-boundary concat is needed: sublane (time) concats of
            # each half, then one fwd|bwd join.
            seq_f = jnp.concatenate(
                [step_hs[t][:, :H] for t in range(T)], axis=0)          # (T*B, H)
            seq_b = jnp.concatenate(
                [step_hs[T - 1 - t][:, H:] for t in range(T)], axis=0)  # (T*B, H)
            seq_rows = jnp.concatenate([seq_f, seq_b], axis=-1)         # (T*B, 2H)
            wih = layer_refs[l + 1][0][...]              # (2H, 2H)
            b = layer_refs[l + 1][2][...]                # (1, 2H)
            xw_rows = jnp.dot(seq_rows, wih,
                              preferred_element_type=jnp.float32) + b
            xw_step = to_steps(xw_rows)

    # out[:, -1, :] = concat(fwd hidden at t=T-1, bwd hidden at t=T-1).
    # fwd h_{T-1} is the last combined step; bwd h_{T-1} is the first one.
    out_last = jnp.concatenate(
        [step_hs[T - 1][:, :H], step_hs[0][:, H:]], axis=-1)   # (B, 2H)

    # ---- fused final Linear ----
    out_ref[...] = (
        jnp.dot(out_last, fcw_ref[...], preferred_element_type=jnp.float32)
        + fcb_ref[...]
    )


_VMEM_SPEC = pl.BlockSpec(memory_space=pltpu.MemorySpace.VMEM)


def birnn_forward(x, layers, fc_w, fc_b):
    """x: (B, T, 1) float32. Returns (B, MODULUS) float32."""
    B, T, d_in = x.shape
    assert d_in == 1
    H2 = layers[0][1].shape[0]
    H = H2 // 2
    M = fc_w.shape[1]
    num_layers = len(layers)

    # Single tiny time-major row view of the raw input (T*B rows); everything
    # else (direction reversal, per-layer concat, last-step slice) happens
    # inside the fused kernel.
    x_rows = jnp.transpose(x, (1, 0, 2)).reshape(T * B, 1)

    flat_params = []
    for (wih, whh, b) in layers:
        flat_params += [wih, whh, b]
    flat_params += [fc_w, fc_b]

    kernel = functools.partial(
        _birnn_kernel, T=T, B=B, H=H, num_layers=num_layers)

    return pl.pallas_call(
        kernel,
        out_shape=jax.ShapeDtypeStruct((B, M), jnp.float32),
        in_specs=[_VMEM_SPEC] * (1 + len(flat_params)),
        out_specs=_VMEM_SPEC,
    )(x_rows, *flat_params)


# ----------------------------------------------------------------------------
# Parameter construction (synthetic, PyTorch-shaped, pre-combined for the
# fused kernel: weights stored (in, out); fwd/bwd concatenated; biases summed)
# ----------------------------------------------------------------------------
def init_params(key, hidden_size, num_layers, modulus):
    H = hidden_size
    H2 = 2 * H
    s = 1.0 / jnp.sqrt(jnp.float32(H))
    layers = []
    for layer in range(num_layers):
        d_in = 1 if layer == 0 else H2
        key, kf1, kf2, kf3, kf4, kb1, kb2, kb3, kb4 = jax.random.split(key, 9)
        wih_f = jax.random.uniform(kf1, (d_in, H), jnp.float32, -s, s)
        whh_f = jax.random.uniform(kf2, (H, H), jnp.float32, -s, s)
        b_f = (jax.random.uniform(kf3, (1, H), jnp.float32, -s, s)
               + jax.random.uniform(kf4, (1, H), jnp.float32, -s, s))
        wih_b = jax.random.uniform(kb1, (d_in, H), jnp.float32, -s, s)
        whh_b = jax.random.uniform(kb2, (H, H), jnp.float32, -s, s)
        b_b = (jax.random.uniform(kb3, (1, H), jnp.float32, -s, s)
               + jax.random.uniform(kb4, (1, H), jnp.float32, -s, s))
        wih_comb = jnp.concatenate([wih_f, wih_b], axis=1)        # (d_in, 2H)
        whh_comb = (jnp.zeros((H2, H2), jnp.float32)
                    .at[:H, :H].set(whh_f)
                    .at[H:, H:].set(whh_b))                       # block-diag
        b_comb = jnp.concatenate([b_f, b_b], axis=1)              # (1, 2H)
        layers.append((wih_comb, whh_comb, b_comb))
    key, k1, k2 = jax.random.split(key, 3)
    sf = 1.0 / jnp.sqrt(jnp.float32(H2))
    fc_w = jax.random.uniform(k1, (H2, modulus), jnp.float32, -sf, sf)
    fc_b = jax.random.uniform(k2, (1, modulus), jnp.float32, -sf, sf)
    return layers, fc_w, fc_b


# ----------------------------------------------------------------------------
# Pure-JAX reference (mirrors torch.nn.RNN(bidirectional) + Linear semantics)
# ----------------------------------------------------------------------------
def birnn_reference(x, layers, fc_w, fc_b):
    B, T, _ = x.shape
    H2 = layers[0][1].shape[0]
    H = H2 // 2
    hi = lax.Precision.HIGHEST
    inp = x
    for (wih, whh, b) in layers:
        wf, wb = wih[:, :H], wih[:, H:]
        whf, whb = whh[:H, :H], whh[H:, H:]
        bf, bb = b[:, :H], b[:, H:]
        hf = jnp.zeros((B, H), jnp.float32)
        outs_f = []
        for t in range(T):
            hf = jnp.tanh(jnp.dot(inp[:, t, :], wf, precision=hi) + bf
                          + jnp.dot(hf, whf, precision=hi))
            outs_f.append(hf)
        hb = jnp.zeros((B, H), jnp.float32)
        outs_b = [None] * T
        for t in range(T - 1, -1, -1):
            hb = jnp.tanh(jnp.dot(inp[:, t, :], wb, precision=hi) + bb
                          + jnp.dot(hb, whb, precision=hi))
            outs_b[t] = hb
        inp = jnp.stack(
            [jnp.concatenate([outs_f[t], outs_b[t]], axis=-1) for t in range(T)],
            axis=1)
    out_last = inp[:, -1, :]
    return jnp.dot(out_last, fc_w, precision=hi) + fc_b


if __name__ == "__main__":
    K = 5            # unused by forward (kept for signature parity)
    MODULUS = 10
    hidden_size = 32
    num_layers = 2
    B, T = 2, 8

    key = jax.random.PRNGKey(0)
    key, kx = jax.random.split(key)
    x = jax.random.normal(kx, (B, T, 1), dtype=jnp.float32)

    layers, fc_w, fc_b = init_params(key, hidden_size, num_layers, MODULUS)

    fwd = jax.jit(birnn_forward)
    out = jax.block_until_ready(fwd(x, layers, fc_w, fc_b))

    ref = jax.block_until_ready(birnn_reference(x, layers, fc_w, fc_b))
    assert out.shape == (B, MODULUS) and out.dtype == jnp.float32
    assert jnp.allclose(out, ref, atol=1e-4, rtol=1e-4), (
        f"max abs err {jnp.max(jnp.abs(out - ref))}")
    print("KERNEL_OK")
</pallas_src>

<mosaic_0001>
module attributes {stable_mosaic.version = 11 : i64} {
  func.func @_birnn_kernel(%arg0: memref<16x1xf32, #tpu.memory_space<vmem>>, %arg1: memref<1x64xf32, #tpu.memory_space<vmem>>, %arg2: memref<64x64xf32, #tpu.memory_space<vmem>>, %arg3: memref<1x64xf32, #tpu.memory_space<vmem>>, %arg4: memref<64x64xf32, #tpu.memory_space<vmem>>, %arg5: memref<64x64xf32, #tpu.memory_space<vmem>>, %arg6: memref<1x64xf32, #tpu.memory_space<vmem>>, %arg7: memref<64x10xf32, #tpu.memory_space<vmem>>, %arg8: memref<1x10xf32, #tpu.memory_space<vmem>>, %arg9: memref<2x10xf32, #tpu.memory_space<vmem>>) attributes {dimension_semantics = [], scalar_prefetch = 0 : i64, scratch_operands = 0 : i64, tpu.core_type = #tpu.core_type<tc>} {
    %c0 = arith.constant 0 : index
    %c0_0 = arith.constant 0 : index
    %0 = vector.load %arg0[%c0, %c0_0] : memref<16x1xf32, #tpu.memory_space<vmem>>, vector<16x1xf32>
    %c0_1 = arith.constant 0 : index
    %c0_2 = arith.constant 0 : index
    %1 = vector.load %arg1[%c0_1, %c0_2] : memref<1x64xf32, #tpu.memory_space<vmem>>, vector<1x64xf32>
    %2 = vector.broadcast %0 : vector<16x1xf32> to vector<16x64xf32>
    %3 = vector.broadcast %1 : vector<1x64xf32> to vector<16x64xf32>
    %4 = arith.mulf %2, %3 : vector<16x64xf32>
    %c0_3 = arith.constant 0 : index
    %c0_4 = arith.constant 0 : index
    %5 = vector.load %arg3[%c0_3, %c0_4] : memref<1x64xf32, #tpu.memory_space<vmem>>, vector<1x64xf32>
    %6 = vector.broadcast %5 : vector<1x64xf32> to vector<16x64xf32>
    %7 = arith.addf %4, %6 : vector<16x64xf32>
    %8 = vector.extract_strided_slice %7 {offsets = [0, 0], sizes = [2, 32], strides = [1, 1]} : vector<16x64xf32> to vector<2x32xf32>
    %9 = vector.extract_strided_slice %7 {offsets = [14, 32], sizes = [2, 32], strides = [1, 1]} : vector<16x64xf32> to vector<2x32xf32>
    %10 = tpu.concatenate %8, %9 in 1 : vector<2x32xf32>, vector<2x32xf32> -> vector<2x64xf32>
    %11 = vector.extract_strided_slice %7 {offsets = [2, 0], sizes = [2, 32], strides = [1, 1]} : vector<16x64xf32> to vector<2x32xf32>
    %12 = vector.extract_strided_slice %7 {offsets = [12, 32], sizes = [2, 32], strides = [1, 1]} : vector<16x64xf32> to vector<2x32xf32>
    %13 = tpu.concatenate %11, %12 in 1 : vector<2x32xf32>, vector<2x32xf32> -> vector<2x64xf32>
    %14 = vector.extract_strided_slice %7 {offsets = [4, 0], sizes = [2, 32], strides = [1, 1]} : vector<16x64xf32> to vector<2x32xf32>
    %15 = vector.extract_strided_slice %7 {offsets = [10, 32], sizes = [2, 32], strides = [1, 1]} : vector<16x64xf32> to vector<2x32xf32>
    %16 = tpu.concatenate %14, %15 in 1 : vector<2x32xf32>, vector<2x32xf32> -> vector<2x64xf32>
    %17 = vector.extract_strided_slice %7 {offsets = [6, 0], sizes = [2, 32], strides = [1, 1]} : vector<16x64xf32> to vector<2x32xf32>
    %18 = vector.extract_strided_slice %7 {offsets = [8, 32], sizes = [2, 32], strides = [1, 1]} : vector<16x64xf32> to vector<2x32xf32>
    %19 = tpu.concatenate %17, %18 in 1 : vector<2x32xf32>, vector<2x32xf32> -> vector<2x64xf32>
    %20 = vector.extract_strided_slice %7 {offsets = [8, 0], sizes = [2, 32], strides = [1, 1]} : vector<16x64xf32> to vector<2x32xf32>
    %21 = vector.extract_strided_slice %7 {offsets = [6, 32], sizes = [2, 32], strides = [1, 1]} : vector<16x64xf32> to vector<2x32xf32>
    %22 = tpu.concatenate %20, %21 in 1 : vector<2x32xf32>, vector<2x32xf32> -> vector<2x64xf32>
    %23 = vector.extract_strided_slice %7 {offsets = [10, 0], sizes = [2, 32], strides = [1, 1]} : vector<16x64xf32> to vector<2x32xf32>
    %24 = vector.extract_strided_slice %7 {offsets = [4, 32], sizes = [2, 32], strides = [1, 1]} : vector<16x64xf32> to vector<2x32xf32>
    %25 = tpu.concatenate %23, %24 in 1 : vector<2x32xf32>, vector<2x32xf32> -> vector<2x64xf32>
    %26 = vector.extract_strided_slice %7 {offsets = [12, 0], sizes = [2, 32], strides = [1, 1]} : vector<16x64xf32> to vector<2x32xf32>
    %27 = vector.extract_strided_slice %7 {offsets = [2, 32], sizes = [2, 32], strides = [1, 1]} : vector<16x64xf32> to vector<2x32xf32>
    %28 = tpu.concatenate %26, %27 in 1 : vector<2x32xf32>, vector<2x32xf32> -> vector<2x64xf32>
    %29 = vector.extract_strided_slice %7 {offsets = [14, 0], sizes = [2, 32], strides = [1, 1]} : vector<16x64xf32> to vector<2x32xf32>
    %30 = vector.extract_strided_slice %7 {offsets = [0, 32], sizes = [2, 32], strides = [1, 1]} : vector<16x64xf32> to vector<2x32xf32>
    %31 = tpu.concatenate %29, %30 in 1 : vector<2x32xf32>, vector<2x32xf32> -> vector<2x64xf32>
    %c0_5 = arith.constant 0 : index
    %c0_6 = arith.constant 0 : index
    %32 = vector.load %arg2[%c0_5, %c0_6] : memref<64x64xf32, #tpu.memory_space<vmem>>, vector<64x64xf32>
    %33 = math.tanh %10 : vector<2x64xf32>
    %cst = arith.constant dense<0.000000e+00> : vector<2x64xf32>
    %34 = tpu.matmul %33, %32, %cst {dimension_numbers = #tpu.dot_dimension_numbers<[1], [0], [0], [1], [0, 0, 1, 1], [], []>} : vector<2x64xf32>, vector<64x64xf32>, vector<2x64xf32> -> vector<2x64xf32>
    %35 = arith.addf %13, %34 : vector<2x64xf32>
    %36 = math.tanh %35 : vector<2x64xf32>
    %cst_7 = arith.constant dense<0.000000e+00> : vector<2x64xf32>
    %37 = tpu.matmul %36, %32, %cst_7 {dimension_numbers = #tpu.dot_dimension_numbers<[1], [0], [0], [1], [0, 0, 1, 1], [], []>} : vector<2x64xf32>, vector<64x64xf32>, vector<2x64xf32> -> vector<2x64xf32>
    %38 = arith.addf %16, %37 : vector<2x64xf32>
    %39 = math.tanh %38 : vector<2x64xf32>
    %cst_8 = arith.constant dense<0.000000e+00> : vector<2x64xf32>
    %40 = tpu.matmul %39, %32, %cst_8 {dimension_numbers = #tpu.dot_dimension_numbers<[1], [0], [0], [1], [0, 0, 1, 1], [], []>} : vector<2x64xf32>, vector<64x64xf32>, vector<2x64xf32> -> vector<2x64xf32>
    %41 = arith.addf %19, %40 : vector<2x64xf32>
    %42 = math.tanh %41 : vector<2x64xf32>
    %cst_9 = arith.constant dense<0.000000e+00> : vector<2x64xf32>
    %43 = tpu.matmul %42, %32, %cst_9 {dimension_numbers = #tpu.dot_dimension_numbers<[1], [0], [0], [1], [0, 0, 1, 1], [], []>} : vector<2x64xf32>, vector<64x64xf32>, vector<2x64xf32> -> vector<2x64xf32>
    %44 = arith.addf %22, %43 : vector<2x64xf32>
    %45 = math.tanh %44 : vector<2x64xf32>
    %cst_10 = arith.constant dense<0.000000e+00> : vector<2x64xf32>
    %46 = tpu.matmul %45, %32, %cst_10 {dimension_numbers = #tpu.dot_dimension_numbers<[1], [0], [0], [1], [0, 0, 1, 1], [], []>} : vector<2x64xf32>, vector<64x64xf32>, vector<2x64xf32> -> vector<2x64xf32>
    %47 = arith.addf %25, %46 : vector<2x64xf32>
    %48 = math.tanh %47 : vector<2x64xf32>
    %cst_11 = arith.constant dense<0.000000e+00> : vector<2x64xf32>
    %49 = tpu.matmul %48, %32, %cst_11 {dimension_numbers = #tpu.dot_dimension_numbers<[1], [0], [0], [1], [0, 0, 1, 1], [], []>} : vector<2x64xf32>, vector<64x64xf32>, vector<2x64xf32> -> vector<2x64xf32>
    %50 = arith.addf %28, %49 : vector<2x64xf32>
    %51 = math.tanh %50 : vector<2x64xf32>
    %cst_12 = arith.constant dense<0.000000e+00> : vector<2x64xf32>
    %52 = tpu.matmul %51, %32, %cst_12 {dimension_numbers = #tpu.dot_dimension_numbers<[1], [0], [0], [1], [0, 0, 1, 1], [], []>} : vector<2x64xf32>, vector<64x64xf32>, vector<2x64xf32> -> vector<2x64xf32>
    %53 = arith.addf %31, %52 : vector<2x64xf32>
    %54 = math.tanh %53 : vector<2x64xf32>
    %55 = vector.extract_strided_slice %33 {offsets = [0, 0], sizes = [2, 32], strides = [1, 1]} : vector<2x64xf32> to vector<2x32xf32>
    %56 = vector.extract_strided_slice %36 {offsets = [0, 0], sizes = [2, 32], strides = [1, 1]} : vector<2x64xf32> to vector<2x32xf32>
    %57 = vector.extract_strided_slice %39 {offsets = [0, 0], sizes = [2, 32], strides = [1, 1]} : vector<2x64xf32> to vector<2x32xf32>
    %58 = vector.extract_strided_slice %42 {offsets = [0, 0], sizes = [2, 32], strides = [1, 1]} : vector<2x64xf32> to vector<2x32xf32>
    %59 = vector.extract_strided_slice %45 {offsets = [0, 0], sizes = [2, 32], strides = [1, 1]} : vector<2x64xf32> to vector<2x32xf32>
    %60 = vector.extract_strided_slice %48 {offsets = [0, 0], sizes = [2, 32], strides = [1, 1]} : vector<2x64xf32> to vector<2x32xf32>
    %61 = vector.extract_strided_slice %51 {offsets = [0, 0], sizes = [2, 32], strides = [1, 1]} : vector<2x64xf32> to vector<2x32xf32>
    %62 = vector.extract_strided_slice %54 {offsets = [0, 0], sizes = [2, 32], strides = [1, 1]} : vector<2x64xf32> to vector<2x32xf32>
    %63 = tpu.concatenate %55, %56, %57, %58, %59, %60, %61, %62 in 0 : vector<2x32xf32>, vector<2x32xf32>, vector<2x32xf32>, vector<2x32xf32>, vector<2x32xf32>, vector<2x32xf32>, vector<2x32xf32>, vector<2x32xf32> -> vector<16x32xf32>
    %64 = vector.extract_strided_slice %54 {offsets = [0, 32], sizes = [2, 32], strides = [1, 1]} : vector<2x64xf32> to vector<2x32xf32>
    %65 = vector.extract_strided_slice %51 {offsets = [0, 32], sizes = [2, 32], strides = [1, 1]} : vector<2x64xf32> to vector<2x32xf32>
    %66 = vector.extract_strided_slice %48 {offsets = [0, 32], sizes = [2, 32], strides = [1, 1]} : vector<2x64xf32> to vector<2x32xf32>
    %67 = vector.extract_strided_slice %45 {offsets = [0, 32], sizes = [2, 32], strides = [1, 1]} : vector<2x64xf32> to vector<2x32xf32>
    %68 = vector.extract_strided_slice %42 {offsets = [0, 32], sizes = [2, 32], strides = [1, 1]} : vector<2x64xf32> to vector<2x32xf32>
    %69 = vector.extract_strided_slice %39 {offsets = [0, 32], sizes = [2, 32], strides = [1, 1]} : vector<2x64xf32> to vector<2x32xf32>
    %70 = vector.extract_strided_slice %36 {offsets = [0, 32], sizes = [2, 32], strides = [1, 1]} : vector<2x64xf32> to vector<2x32xf32>
    %71 = vector.extract_strided_slice %33 {offsets = [0, 32], sizes = [2, 32], strides = [1, 1]} : vector<2x64xf32> to vector<2x32xf32>
    %72 = tpu.concatenate %64, %65, %66, %67, %68, %69, %70, %71 in 0 : vector<2x32xf32>, vector<2x32xf32>, vector<2x32xf32>, vector<2x32xf32>, vector<2x32xf32>, vector<2x32xf32>, vector<2x32xf32>, vector<2x32xf32> -> vector<16x32xf32>
    %73 = tpu.concatenate %63, %72 in 1 : vector<16x32xf32>, vector<16x32xf32> -> vector<16x64xf32>
    %c0_13 = arith.constant 0 : index
    %c0_14 = arith.constant 0 : index
    %74 = vector.load %arg4[%c0_13, %c0_14] : memref<64x64xf32, #tpu.memory_space<vmem>>, vector<64x64xf32>
    %c0_15 = arith.constant 0 : index
    %c0_16 = arith.constant 0 : index
    %75 = vector.load %arg6[%c0_15, %c0_16] : memref<1x64xf32, #tpu.memory_space<vmem>>, vector<1x64xf32>
    %cst_17 = arith.constant dense<0.000000e+00> : vector<16x64xf32>
    %76 = tpu.matmul %73, %74, %cst_17 {dimension_numbers = #tpu.dot_dimension_numbers<[1], [0], [0], [1], [0, 0, 1, 1], [], []>} : vector<16x64xf32>, vector<64x64xf32>, vector<16x64xf32> -> vector<16x64xf32>
    %77 = vector.broadcast %75 : vector<1x64xf32> to vector<16x64xf32>
    %78 = arith.addf %76, %77 : vector<16x64xf32>
    %79 = vector.extract_strided_slice %78 {offsets = [0, 0], sizes = [2, 32], strides = [1, 1]} : vector<16x64xf32> to vector<2x32xf32>
    %80 = vector.extract_strided_slice %78 {offsets = [14, 32], sizes = [2, 32], strides = [1, 1]} : vector<16x64xf32> to vector<2x32xf32>
    %81 = tpu.concatenate %79, %80 in 1 : vector<2x32xf32>, vector<2x32xf32> -> vector<2x64xf32>
    %82 = vector.extract_strided_slice %78 {offsets = [2, 0], sizes = [2, 32], strides = [1, 1]} : vector<16x64xf32> to vector<2x32xf32>
    %83 = vector.extract_strided_slice %78 {offsets = [12, 32], sizes = [2, 32], strides = [1, 1]} : vector<16x64xf32> to vector<2x32xf32>
    %84 = tpu.concatenate %82, %83 in 1 : vector<2x32xf32>, vector<2x32xf32> -> vector<2x64xf32>
    %85 = vector.extract_strided_slice %78 {offsets = [4, 0], sizes = [2, 32], strides = [1, 1]} : vector<16x64xf32> to vector<2x32xf32>
    %86 = vector.extract_strided_slice %78 {offsets = [10, 32], sizes = [2, 32], strides = [1, 1]} : vector<16x64xf32> to vector<2x32xf32>
    %87 = tpu.concatenate %85, %86 in 1 : vector<2x32xf32>, vector<2x32xf32> -> vector<2x64xf32>
    %88 = vector.extract_strided_slice %78 {offsets = [6, 0], sizes = [2, 32], strides = [1, 1]} : vector<16x64xf32> to vector<2x32xf32>
    %89 = vector.extract_strided_slice %78 {offsets = [8, 32], sizes = [2, 32], strides = [1, 1]} : vector<16x64xf32> to vector<2x32xf32>
    %90 = tpu.concatenate %88, %89 in 1 : vector<2x32xf32>, vector<2x32xf32> -> vector<2x64xf32>
    %91 = vector.extract_strided_slice %78 {offsets = [8, 0], sizes = [2, 32], strides = [1, 1]} : vector<16x64xf32> to vector<2x32xf32>
    %92 = vector.extract_strided_slice %78 {offsets = [6, 32], sizes = [2, 32], strides = [1, 1]} : vector<16x64xf32> to vector<2x32xf32>
    %93 = tpu.concatenate %91, %92 in 1 : vector<2x32xf32>, vector<2x32xf32> -> vector<2x64xf32>
    %94 = vector.extract_strided_slice %78 {offsets = [10, 0], sizes = [2, 32], strides = [1, 1]} : vector<16x64xf32> to vector<2x32xf32>
    %95 = vector.extract_strided_slice %78 {offsets = [4, 32], sizes = [2, 32], strides = [1, 1]} : vector<16x64xf32> to vector<2x32xf32>
    %96 = tpu.concatenate %94, %95 in 1 : vector<2x32xf32>, vector<2x32xf32> -> vector<2x64xf32>
    %97 = vector.extract_strided_slice %78 {offsets = [12, 0], sizes = [2, 32], strides = [1, 1]} : vector<16x64xf32> to vector<2x32xf32>
    %98 = vector.extract_strided_slice %78 {offsets = [2, 32], sizes = [2, 32], strides = [1, 1]} : vector<16x64xf32> to vector<2x32xf32>
    %99 = tpu.concatenate %97, %98 in 1 : vector<2x32xf32>, vector<2x32xf32> -> vector<2x64xf32>
    %100 = vector.extract_strided_slice %78 {offsets = [14, 0], sizes = [2, 32], strides = [1, 1]} : vector<16x64xf32> to vector<2x32xf32>
    %101 = vector.extract_strided_slice %78 {offsets = [0, 32], sizes = [2, 32], strides = [1, 1]} : vector<16x64xf32> to vector<2x32xf32>
    %102 = tpu.concatenate %100, %101 in 1 : vector<2x32xf32>, vector<2x32xf32> -> vector<2x64xf32>
    %c0_18 = arith.constant 0 : index
    %c0_19 = arith.constant 0 : index
    %103 = vector.load %arg5[%c0_18, %c0_19] : memref<64x64xf32, #tpu.memory_space<vmem>>, vector<64x64xf32>
    %104 = math.tanh %81 : vector<2x64xf32>
    %cst_20 = arith.constant dense<0.000000e+00> : vector<2x64xf32>
    %105 = tpu.matmul %104, %103, %cst_20 {dimension_numbers = #tpu.dot_dimension_numbers<[1], [0], [0], [1], [0, 0, 1, 1], [], []>} : vector<2x64xf32>, vector<64x64xf32>, vector<2x64xf32> -> vector<2x64xf32>
    %106 = arith.addf %84, %105 : vector<2x64xf32>
    %107 = math.tanh %106 : vector<2x64xf32>
    %cst_21 = arith.constant dense<0.000000e+00> : vector<2x64xf32>
    %108 = tpu.matmul %107, %103, %cst_21 {dimension_numbers = #tpu.dot_dimension_numbers<[1], [0], [0], [1], [0, 0, 1, 1], [], []>} : vector<2x64xf32>, vector<64x64xf32>, vector<2x64xf32> -> vector<2x64xf32>
    %109 = arith.addf %87, %108 : vector<2x64xf32>
    %110 = math.tanh %109 : vector<2x64xf32>
    %cst_22 = arith.constant dense<0.000000e+00> : vector<2x64xf32>
    %111 = tpu.matmul %110, %103, %cst_22 {dimension_numbers = #tpu.dot_dimension_numbers<[1], [0], [0], [1], [0, 0, 1, 1], [], []>} : vector<2x64xf32>, vector<64x64xf32>, vector<2x64xf32> -> vector<2x64xf32>
    %112 = arith.addf %90, %111 : vector<2x64xf32>
    %113 = math.tanh %112 : vector<2x64xf32>
    %cst_23 = arith.constant dense<0.000000e+00> : vector<2x64xf32>
    %114 = tpu.matmul %113, %103, %cst_23 {dimension_numbers = #tpu.dot_dimension_numbers<[1], [0], [0], [1], [0, 0, 1, 1], [], []>} : vector<2x64xf32>, vector<64x64xf32>, vector<2x64xf32> -> vector<2x64xf32>
    %115 = arith.addf %93, %114 : vector<2x64xf32>
    %116 = math.tanh %115 : vector<2x64xf32>
    %cst_24 = arith.constant dense<0.000000e+00> : vector<2x64xf32>
    %117 = tpu.matmul %116, %103, %cst_24 {dimension_numbers = #tpu.dot_dimension_numbers<[1], [0], [0], [1], [0, 0, 1, 1], [], []>} : vector<2x64xf32>, vector<64x64xf32>, vector<2x64xf32> -> vector<2x64xf32>
    %118 = arith.addf %96, %117 : vector<2x64xf32>
    %119 = math.tanh %118 : vector<2x64xf32>
    %cst_25 = arith.constant dense<0.000000e+00> : vector<2x64xf32>
    %120 = tpu.matmul %119, %103, %cst_25 {dimension_numbers = #tpu.dot_dimension_numbers<[1], [0], [0], [1], [0, 0, 1, 1], [], []>} : vector<2x64xf32>, vector<64x64xf32>, vector<2x64xf32> -> vector<2x64xf32>
    %121 = arith.addf %99, %120 : vector<2x64xf32>
    %122 = math.tanh %121 : vector<2x64xf32>
    %cst_26 = arith.constant dense<0.000000e+00> : vector<2x64xf32>
    %123 = tpu.matmul %122, %103, %cst_26 {dimension_numbers = #tpu.dot_dimension_numbers<[1], [0], [0], [1], [0, 0, 1, 1], [], []>} : vector<2x64xf32>, vector<64x64xf32>, vector<2x64xf32> -> vector<2x64xf32>
    %124 = arith.addf %102, %123 : vector<2x64xf32>
    %125 = math.tanh %124 : vector<2x64xf32>
    %126 = vector.extract_strided_slice %125 {offsets = [0, 0], sizes = [2, 32], strides = [1, 1]} : vector<2x64xf32> to vector<2x32xf32>
    %127 = vector.extract_strided_slice %104 {offsets = [0, 32], sizes = [2, 32], strides = [1, 1]} : vector<2x64xf32> to vector<2x32xf32>
    %128 = tpu.concatenate %126, %127 in 1 : vector<2x32xf32>, vector<2x32xf32> -> vector<2x64xf32>
    %c0_27 = arith.constant 0 : index
    %c0_28 = arith.constant 0 : index
    %129 = vector.load %arg7[%c0_27, %c0_28] : memref<64x10xf32, #tpu.memory_space<vmem>>, vector<64x10xf32>
    %cst_29 = arith.constant dense<0.000000e+00> : vector<2x10xf32>
    %130 = tpu.matmul %128, %129, %cst_29 {dimension_numbers = #tpu.dot_dimension_numbers<[1], [0], [0], [1], [0, 0, 1, 1], [], []>} : vector<2x64xf32>, vector<64x10xf32>, vector<2x10xf32> -> vector<2x10xf32>
    %c0_30 = arith.constant 0 : index
    %c0_31 = arith.constant 0 : index
    %131 = vector.load %arg8[%c0_30, %c0_31] : memref<1x10xf32, #tpu.memory_space<vmem>>, vector<1x10xf32>
    %132 = vector.broadcast %131 : vector<1x10xf32> to vector<2x10xf32>
    %133 = arith.addf %130, %132 : vector<2x10xf32>
    %c0_32 = arith.constant 0 : index
    %c0_33 = arith.constant 0 : index
    %134 = vector.load %arg9[%c0_32, %c0_33] : memref<2x10xf32, #tpu.memory_space<vmem>>, vector<2x10xf32>
    tpu.vector_store %arg9[%c0_32, %c0_33], %133 {strides = array<i32>} : memref<2x10xf32, #tpu.memory_space<vmem>>, vector<2x10xf32>,
    return
  }
}

</mosaic_0001>

<llo_original>
// kernel: birnn_forward.1
$region0: #{birnn_forward.1}
  #allocation0 [shape = 'u32[]', space=smem, size = 0x4, offset = 0x4, fixed_abs, tag = 'smem constant byte address 0x4 - core index']
  #allocation1 [shape = 'u32[144,128]{1,0:T(1,128)}', space=vmem, size = 0x12000, scoped, tag = 'internal scratch']
  %s0 = inlined_call_operand.vmem [shape: f32[16,1], index: 0, kind: input, shape index: {}]
  %s1 = inlined_call_operand.hbm [shape: f32[1,64], index: 1, kind: input, shape index: {}]
  %s2 = inlined_call_operand.vmem [shape: f32[64,64], index: 2, kind: input, shape index: {}]
  %s3 = inlined_call_operand.hbm [shape: f32[1,64], index: 3, kind: input, shape index: {}]
  %s4 = inlined_call_operand.vmem [shape: f32[64,64], index: 4, kind: input, shape index: {}]
  %s5 = inlined_call_operand.hbm [shape: f32[64,64], index: 5, kind: input, shape index: {}]
  %s6 = inlined_call_operand.hbm [shape: f32[1,64], index: 6, kind: input, shape index: {}]
  %s7 = inlined_call_operand.vmem [shape: f32[64,10], index: 7, kind: input, shape index: {}]
  %s8 = inlined_call_operand.vmem [shape: f32[1,10], index: 8, kind: input, shape index: {}]
  %s9 = inlined_call_operand.hbm [shape: f32[2,10], index: 9, kind: output, shape index: {}]
  %s10 = sld [smem:[#allocation0]]
  $region62: #{birnn_forward.1} parent=0
    _
  %s12 = ssub.s32 1, %s10
  %s13 = scalar_select 0, %s12, %s10
  $region1: #{birnn_forward.1} parent=0
    #allocation2 [shape = 'u8[512]{0}', space=vmem, size = 0x400, scoped, tag = 'input window, operand 1, single buffered']
    #allocation3 [shape = 's32[1]{0}', space=sflag, size = 0x4, scoped, tag = 'scoped memory for birnn_forward.1']
    #allocation4 [shape = 's32[1]{0}', space=sflag, size = 0x4, scoped, tag = 'scoped memory for birnn_forward.1']
    #allocation5 [shape = 'u8[512]{0}', space=vmem, size = 0x400, scoped, tag = 'input window, operand 3, single buffered']
    #allocation6 [shape = 's32[1]{0}', space=sflag, size = 0x4, scoped, tag = 'scoped memory for birnn_forward.1']
    #allocation7 [shape = 'u8[32768]{0}', space=vmem, size = 0x8000, scoped, tag = 'input window, operand 5, single buffered']
    #allocation8 [shape = 'u8[512]{0}', space=vmem, size = 0x400, scoped, tag = 'input window, operand 6, single buffered']
    #allocation9 [shape = 's32[1]{0}', space=sflag, size = 0x4, scoped, tag = 'scoped memory for birnn_forward.1']
    #allocation10 [shape = 'u8[1024]{0}', space=vmem, size = 0x400, scoped, tag = 'output window, operand 0, single buffered']
    %14 = vsyncpa [#allocation3], 0
    %15 = vsyncpa [#allocation6], 0
    %16 = vsyncpa [#allocation9], 0
    %17 = vsyncpa [#allocation4], 0
    // Predicated region
    $region2: #{birnn_forward.1} parent=1 // pred_check
      _
    $region3: #{birnn_forward.1} parent=1 // pred_check_branch
      %19 = sbr.rel (0) target = $region5
    $region4: #{birnn_forward.1} parent=1 // pred_region
      _
    $region5: #{birnn_forward.1} parent=1 // pred_fallthru
      _
    // Predicated region
    $region6: #{birnn_forward.1} parent=1 // pred_check
      _
    $region7: #{birnn_forward.1} parent=1 // pred_check_branch
      %21 = sbr.rel (0) target = $region9
    $region8: #{birnn_forward.1} parent=1 // pred_region
      %s23 = ssub.s32 16, 16
      %24 = vsyncadd [#allocation3], %s23
      %s26 = sshll.u32 [#allocation2], 4
      %s27 = int_to_ptr.vmem [resolvable:$true] %s26
      %29 = dma.hbm_to_vmem [thread:$0]  %s1, 16, %s27, [#allocation3]
    $region9: #{birnn_forward.1} parent=1 // pred_fallthru
      _
    // Predicated region
    $region10: #{birnn_forward.1} parent=1 // pred_check
      _
    $region11: #{birnn_forward.1} parent=1 // pred_check_branch
      %31 = sbr.rel (0) target = $region13
    $region12: #{birnn_forward.1} parent=1 // pred_region
      _
    $region13: #{birnn_forward.1} parent=1 // pred_fallthru
      _
    // Predicated region
    $region14: #{birnn_forward.1} parent=1 // pred_check
      _
    $region15: #{birnn_forward.1} parent=1 // pred_check_branch
      %33 = sbr.rel (0) target = $region17
    $region16: #{birnn_forward.1} parent=1 // pred_region
      %s35 = ssub.s32 16, 16
      %36 = vsyncadd [#allocation6], %s35
      %s38 = sshll.u32 [#allocation5], 4
      %s39 = int_to_ptr.vmem [resolvable:$true] %s38
      %41 = dma.hbm_to_vmem [thread:$0]  %s3, 16, %s39, [#allocation6]
    $region17: #{birnn_forward.1} parent=1 // pred_fallthru
      _
    // Predicated region
    $region18: #{birnn_forward.1} parent=1 // pred_check
      _
    $region19: #{birnn_forward.1} parent=1 // pred_check_branch
      %43 = sbr.rel (0) target = $region21
    $region20: #{birnn_forward.1} parent=1 // pred_region
      _
    $region21: #{birnn_forward.1} parent=1 // pred_fallthru
      _
    // Predicated region
    $region22: #{birnn_forward.1} parent=1 // pred_check
      _
    $region23: #{birnn_forward.1} parent=1 // pred_check_branch
      %45 = sbr.rel (0) target = $region25
    $region24: #{birnn_forward.1} parent=1 // pred_region
      %s47 = ssub.s32 1024, 1024
      %48 = vsyncadd [#allocation6], %s47
      %s49 = sshll.u32 [#allocation7], 4
      %s50 = int_to_ptr.vmem [resolvable:$true] %s49
      %55 = dma.hbm_to_vmem [thread:$0]  %s5, 1024, %s50, [#allocation6], 128, 128, 8
    $region25: #{birnn_forward.1} parent=1 // pred_fallthru
      _
    // Predicated region
    $region26: #{birnn_forward.1} parent=1 // pred_check
      _
    $region27: #{birnn_forward.1} parent=1 // pred_check_branch
      %57 = sbr.rel (0) target = $region29
    $region28: #{birnn_forward.1} parent=1 // pred_region
      %s59 = ssub.s32 16, 16
      %60 = vsyncadd [#allocation9], %s59
      %s62 = sshll.u32 [#allocation8], 4
      %s63 = int_to_ptr.vmem [resolvable:$true] %s62
      %65 = dma.hbm_to_vmem [thread:$0]  %s6, 16, %s63, [#allocation9]
    $region29: #{birnn_forward.1} parent=1 // pred_fallthru
      _
    // Predicated region
    $region30: #{birnn_forward.1} parent=1 // pred_check
      _
    $region31: #{birnn_forward.1} parent=1 // pred_check_branch
      %67 = sbr.rel (0) target = $region33
    $region32: #{birnn_forward.1} parent=1 // pred_region
      _
    $region33: #{birnn_forward.1} parent=1 // pred_fallthru
      _
    // Predicated region
    $region34: #{birnn_forward.1} parent=1 // pred_check
      _
    $region35: #{birnn_forward.1} parent=1 // pred_check_branch
      %69 = sbr.rel (0) target = $region37
    $region36: #{birnn_forward.1} parent=1 // pred_region
      _
    $region37: #{birnn_forward.1} parent=1 // pred_fallthru
      _
    // Predicated region
    $region38: #{birnn_forward.1} parent=1 // pred_check
      _
    $region39: #{birnn_forward.1} parent=1 // pred_check_branch
      %71 = sbr.rel (0) target = $region41
    $region40: #{birnn_forward.1} parent=1 // pred_region
      %72 = dma.done [#allocation3], 16
    $region41: #{birnn_forward.1} parent=1 // pred_fallthru
      _
    // Predicated region
    $region42: #{birnn_forward.1} parent=1 // pred_check
      _
    $region43: #{birnn_forward.1} parent=1 // pred_check_branch
      %74 = sbr.rel (0) target = $region45
    $region44: #{birnn_forward.1} parent=1 // pred_region
      %75 = dma.done [#allocation6], 16
    $region45: #{birnn_forward.1} parent=1 // pred_fallthru
      _
    // Predicated region
    $region46: #{birnn_forward.1} parent=1 // pred_check
      _
    $region47: #{birnn_forward.1} parent=1 // pred_check_branch
      %77 = sbr.rel (0) target = $region49
    $region48: #{birnn_forward.1} parent=1 // pred_region
      %78 = dma.done [#allocation6], 1024
    $region49: #{birnn_forward.1} parent=1 // pred_fallthru
      _
    // Predicated region
    $region50: #{birnn_forward.1} parent=1 // pred_check
      _
    $region51: #{birnn_forward.1} parent=1 // pred_check_branch
      %80 = sbr.rel (0) target = $region53
    $region52: #{birnn_forward.1} parent=1 // pred_region
      %81 = dma.done [#allocation9], 16
    $region53: #{birnn_forward.1} parent=1 // pred_fallthru
      _
    %v82 = vld [vmem:[%s0] sm:$0xff]
    %v83 = vld [vmem:[%s0 + $0x8] sm:$0xff]
    %v84 = vld [vmem:[#allocation2] sm:$0x1]
    %86 = vset.pattern.permute.xlu0 0
    %87 = vperm.xlu0 %86, %v82
    %v88 = vpop.permute.xlu0 %87
    %91 = vset.pattern.permute.xlu0 0
    %92 = vperm.xlu0 %91, %v83
    %v93 = vpop.permute.xlu0 %92
    %v96 = vlaneseq
    %v97 = vshrl.u32 %v96, 7
    %v98 = vsub.s32 0, %v97
    %v99 = vrot.slane %v84, %v98
    %v101 = vmul.f32 %v88, %v99
    %v102 = vmul.f32 %v93, %v99
    %v103 = vld [vmem:[#allocation5] sm:$0x1]
    %v105 = vlaneseq
    %v106 = vshrl.u32 %v105, 7
    %v107 = vsub.s32 0, %v106
    %v108 = vrot.slane %v103, %v107
    %v110 = vadd.f32 %v101, %v108
    %v111 = vadd.f32 %v102, %v108
    %v113 = vrot.slane %v111, 6
    %vm115 = vcmask 261120
    %v116 = vsel %vm115, %v110, %v113
    %v117 = vrot.slane %v111, 2
    %v119 = vsel %vm115, %v110, %v117
    %v121 = vrot.slane %v110, 6
    %v123 = vsel %vm115, %v111, %v121
    %v124 = vrot.slane %v110, 2
    %v126 = vsel %vm115, %v111, %v124
    %v127 = vld [vmem:[%s2] sm:$0xff]
    %v128 = vld [vmem:[%s2 + $0x8] sm:$0xff]
    %v129 = vld [vmem:[%s2 + $0x10] sm:$0xff]
    %v130 = vld [vmem:[%s2 + $0x18] sm:$0xff]
    %v131 = vld [vmem:[%s2 + $0x20] sm:$0xff]
    %v132 = vld [vmem:[%s2 + $0x28] sm:$0xff]
    %v133 = vld [vmem:[%s2 + $0x30] sm:$0xff]
    %v134 = vld [vmem:[%s2 + $0x38] sm:$0xff]
    %v135 = vtanh.pop %v116
    %vm136 = vcmask 523264
    %v138 = vsel %vm136, %v135, 0
    %140 = vmatprep.subr.mxu0 0.0
    %141 = vmatpush1.msra.mxu0 %v127
    %142 = vmatprep.subr.mxu0 0.0
    %143 = vmatpush1.msra.mxu0 %v128
    %144 = vmatprep.subr.mxu0 0.0
    %145 = vmatpush1.msra.mxu0 %v129
    %146 = vmatprep.subr.mxu0 0.0
    %147 = vmatpush1.msra.mxu0 %v130
    %148 = vmatprep.subr.mxu0 0.0
    %149 = vmatpush1.msra.mxu0 %v131
    %150 = vmatprep.subr.mxu0 0.0
    %151 = vmatpush1.msra.mxu0 %v132
    %152 = vmatprep.subr.mxu0 0.0
    %153 = vmatpush1.msra.mxu0 %v133
    %154 = vmatprep.subr.mxu0 0.0
    %155 = vmatpush1.msra.mxu0 %v134
    %156 = vmatprep.subr.mxu0 0.0
    %157 = vmatpush1.msra.mxu0 0.0
    %158 = vmatprep.subr.mxu0 0.0
    %159 = vmatpush1.msra.mxu0 0.0
    %160 = vmatprep.subr.mxu0 0.0
    %161 = vmatpush1.msra.mxu0 0.0
    %162 = vmatprep.subr.mxu0 0.0
    %163 = vmatpush1.msra.mxu0 0.0
    %164 = vmatprep.subr.mxu0 0.0
    %165 = vmatpush1.msra.mxu0 0.0
    %166 = vmatprep.subr.mxu0 0.0
    %167 = vmatpush1.msra.mxu0 0.0
    %168 = vmatprep.subr.mxu0 0.0
    %169 = vmatpush1.msra.mxu0 0.0
    %170 = vmatprep.subr.mxu0 0.0
    %171 = vmatpush1.msra.mxu0 0.0
    %172 = vmatprep.subr.mxu0 0.0
    %173 = vmatpush1.msra.mxu0 0.0
    %174 = vmatprep.subr.mxu0 0.0
    %175 = vmatpush1.msra.mxu0 0.0
    %176 = vmatprep.subr.mxu0 0.0
    %177 = vmatpush1.msra.mxu0 0.0
    %178 = vmatprep.subr.mxu0 0.0
    %179 = vmatpush1.msra.mxu0 0.0
    %180 = vmatprep.subr.mxu0 0.0
    %181 = vmatpush1.msra.mxu0 0.0
    %182 = vmatprep.subr.mxu0 0.0
    %183 = vmatpush1.msra.mxu0 0.0
    %184 = vmatprep.subr.mxu0 0.0
    %185 = vmatpush1.msra.mxu0 0.0
    %186 = vmatprep.subr.mxu0 0.0
    %187 = vmatpush1.msra.mxu0 0.0
    %188 = vmatprep.subr.mxu0 0.0
    %189 = vmatpush1.msra.mxu0 0.0
    %190 = vmatprep.subr.mxu0 0.0
    %191 = vmatpush1.msra.mxu0 0.0
    %192 = vmatprep.subr.mxu0 0.0
    %193 = vmatpush1.msra.mxu0 0.0
    %194 = vmatprep.subr.mxu0 0.0
    %195 = vmatpush1.msra.mxu0 0.0
    %196 = vmatprep.subr.mxu0 0.0
    %197 = vmatpush1.msra.mxu0 0.0
    %198 = vmatprep.subr.mxu0 0.0
    %199 = vmatpush1.msra.mxu0 0.0
    %200 = vmatprep.subr.mxu0 0.0
    %201 = vmatpush1.msra.mxu0 0.0
    %202 = vmatprep.subr.mxu0 0.0
    %203 = vmatpush1.msra.mxu0 0.0
    %204 = vmatprep.mubr.f32.mxu0 0.0
    %205 = vmatmul.mubr.f32.gmra.mrb[0].mxu0 %v138
    %v206 = vpop.f32.mrb[0].mxu0
    %v207 = vadd.f32 0.0, %v206
    %v208 = vpop.f32.mrb[0].mxu0
    %209 = vdwg.mxu0
    %v211 = vrot.slane %v207, 6
    %v213 = vadd.f32 %v119, %v211
    %v214 = vtanh.pop %v213
    %v216 = vrot.slane %v214, 2
    %v217 = vsel %vm136, %v216, 0
    %219 = vmatprep.subr.mxu0 0.0
    %220 = vmatpush1.msra.mxu0 %v127
    %221 = vmatprep.subr.mxu0 0.0
    %222 = vmatpush1.msra.mxu0 %v128
    %223 = vmatprep.subr.mxu0 0.0
    %224 = vmatpush1.msra.mxu0 %v129
    %225 = vmatprep.subr.mxu0 0.0
    %226 = vmatpush1.msra.mxu0 %v130
    %227 = vmatprep.subr.mxu0 0.0
    %228 = vmatpush1.msra.mxu0 %v131
    %229 = vmatprep.subr.mxu0 0.0
    %230 = vmatpush1.msra.mxu0 %v132
    %231 = vmatprep.subr.mxu0 0.0
    %232 = vmatpush1.msra.mxu0 %v133
    %233 = vmatprep.subr.mxu0 0.0
    %234 = vmatpush1.msra.mxu0 %v134
    %235 = vmatprep.subr.mxu0 0.0
    %236 = vmatpush1.msra.mxu0 0.0
    %237 = vmatprep.subr.mxu0 0.0
    %238 = vmatpush1.msra.mxu0 0.0
    %239 = vmatprep.subr.mxu0 0.0
    %240 = vmatpush1.msra.mxu0 0.0
    %241 = vmatprep.subr.mxu0 0.0
    %242 = vmatpush1.msra.mxu0 0.0
    %243 = vmatprep.subr.mxu0 0.0
    %244 = vmatpush1.msra.mxu0 0.0
    %245 = vmatprep.subr.mxu0 0.0
    %246 = vmatpush1.msra.mxu0 0.0
    %247 = vmatprep.subr.mxu0 0.0
    %248 = vmatpush1.msra.mxu0 0.0
    %249 = vmatprep.subr.mxu0 0.0
    %250 = vmatpush1.msra.mxu0 0.0
    %251 = vmatprep.subr.mxu0 0.0
    %252 = vmatpush1.msra.mxu0 0.0
    %253 = vmatprep.subr.mxu0 0.0
    %254 = vmatpush1.msra.mxu0 0.0
    %255 = vmatprep.subr.mxu0 0.0
    %256 = vmatpush1.msra.mxu0 0.0
    %257 = vmatprep.subr.mxu0 0.0
    %258 = vmatpush1.msra.mxu0 0.0
    %259 = vmatprep.subr.mxu0 0.0
    %260 = vmatpush1.msra.mxu0 0.0
    %261 = vmatprep.subr.mxu0 0.0
    %262 = vmatpush1.msra.mxu0 0.0
    %263 = vmatprep.subr.mxu0 0.0
    %264 = vmatpush1.msra.mxu0 0.0
    %265 = vmatprep.subr.mxu0 0.0
    %266 = vmatpush1.msra.mxu0 0.0
    %267 = vmatprep.subr.mxu0 0.0
    %268 = vmatpush1.msra.mxu0 0.0
    %269 = vmatprep.subr.mxu0 0.0
    %270 = vmatpush1.msra.mxu0 0.0
    %271 = vmatprep.subr.mxu0 0.0
    %272 = vmatpush1.msra.mxu0 0.0
    %273 = vmatprep.subr.mxu0 0.0
    %274 = vmatpush1.msra.mxu0 0.0
    %275 = vmatprep.subr.mxu0 0.0
    %276 = vmatpush1.msra.mxu0 0.0
    %277 = vmatprep.subr.mxu0 0.0
    %278 = vmatpush1.msra.mxu0 0.0
    %279 = vmatprep.subr.mxu0 0.0
    %280 = vmatpush1.msra.mxu0 0.0
    %281 = vmatprep.subr.mxu0 0.0
    %282 = vmatpush1.msra.mxu0 0.0
    %283 = vmatprep.mubr.f32.mxu0 0.0
    %284 = vmatmul.mubr.f32.gmra.mrb[0].mxu0 %v217
    %v285 = vpop.f32.mrb[0].mxu0
    %v286 = vadd.f32 0.0, %v285
    %v287 = vpop.f32.mrb[0].mxu0
    %288 = vdwg.mxu0
    %v290 = vrot.slane %v286, 4
    %v292 = vadd.f32 %v116, %v290
    %v293 = vtanh.pop %v292
    %v295 = vrot.slane %v293, 4
    %v296 = vsel %vm136, %v295, 0
    %298 = vmatprep.subr.mxu0 0.0
    %299 = vmatpush1.msra.mxu0 %v127
    %300 = vmatprep.subr.mxu0 0.0
    %301 = vmatpush1.msra.mxu0 %v128
    %302 = vmatprep.subr.mxu0 0.0
    %303 = vmatpush1.msra.mxu0 %v129
    %304 = vmatprep.subr.mxu0 0.0
    %305 = vmatpush1.msra.mxu0 %v130
    %306 = vmatprep.subr.mxu0 0.0
    %307 = vmatpush1.msra.mxu0 %v131
    %308 = vmatprep.subr.mxu0 0.0
    %309 = vmatpush1.msra.mxu0 %v132
    %310 = vmatprep.subr.mxu0 0.0
    %311 = vmatpush1.msra.mxu0 %v133
    %312 = vmatprep.subr.mxu0 0.0
    %313 = vmatpush1.msra.mxu0 %v134
    %314 = vmatprep.subr.mxu0 0.0
    %315 = vmatpush1.msra.mxu0 0.0
    %316 = vmatprep.subr.mxu0 0.0
    %317 = vmatpush1.msra.mxu0 0.0
    %318 = vmatprep.subr.mxu0 0.0
    %319 = vmatpush1.msra.mxu0 0.0
    %320 = vmatprep.subr.mxu0 0.0
    %321 = vmatpush1.msra.mxu0 0.0
    %322 = vmatprep.subr.mxu0 0.0
    %323 = vmatpush1.msra.mxu0 0.0
    %324 = vmatprep.subr.mxu0 0.0
    %325 = vmatpush1.msra.mxu0 0.0
    %326 = vmatprep.subr.mxu0 0.0
    %327 = vmatpush1.msra.mxu0 0.0
    %328 = vmatprep.subr.mxu0 0.0
    %329 = vmatpush1.msra.mxu0 0.0
    %330 = vmatprep.subr.mxu0 0.0
    %331 = vmatpush1.msra.mxu0 0.0
    %332 = vmatprep.subr.mxu0 0.0
    %333 = vmatpush1.msra.mxu0 0.0
    %334 = vmatprep.subr.mxu0 0.0
    %335 = vmatpush1.msra.mxu0 0.0
    %336 = vmatprep.subr.mxu0 0.0
    %337 = vmatpush1.msra.mxu0 0.0
    %338 = vmatprep.subr.mxu0 0.0
    %339 = vmatpush1.msra.mxu0 0.0
    %340 = vmatprep.subr.mxu0 0.0
    %341 = vmatpush1.msra.mxu0 0.0
    %342 = vmatprep.subr.mxu0 0.0
    %343 = vmatpush1.msra.mxu0 0.0
    %344 = vmatprep.subr.mxu0 0.0
    %345 = vmatpush1.msra.mxu0 0.0
    %346 = vmatprep.subr.mxu0 0.0
    %347 = vmatpush1.msra.mxu0 0.0
    %348 = vmatprep.subr.mxu0 0.0
    %349 = vmatpush1.msra.mxu0 0.0
    %350 = vmatprep.subr.mxu0 0.0
    %351 = vmatpush1.msra.mxu0 0.0
    %352 = vmatprep.subr.mxu0 0.0
    %353 = vmatpush1.msra.mxu0 0.0
    %354 = vmatprep.subr.mxu0 0.0
    %355 = vmatpush1.msra.mxu0 0.0
    %356 = vmatprep.subr.mxu0 0.0
    %357 = vmatpush1.msra.mxu0 0.0
    %358 = vmatprep.subr.mxu0 0.0
    %359 = vmatpush1.msra.mxu0 0.0
    %360 = vmatprep.subr.mxu0 0.0
    %361 = vmatpush1.msra.mxu0 0.0
    %362 = vmatprep.mubr.f32.mxu0 0.0
    %363 = vmatmul.mubr.f32.gmra.mrb[0].mxu0 %v296
    %v364 = vpop.f32.mrb[0].mxu0
    %v365 = vadd.f32 0.0, %v364
    %v366 = vpop.f32.mrb[0].mxu0
    %367 = vdwg.mxu0
    %v369 = vrot.slane %v365, 2
    %v371 = vadd.f32 %v119, %v369
    %v372 = vtanh.pop %v371
    %v374 = vrot.slane %v372, 6
    %v375 = vsel %vm136, %v374, 0
    %377 = vmatprep.subr.mxu0 0.0
    %378 = vmatpush1.msra.mxu0 %v127
    %379 = vmatprep.subr.mxu0 0.0
    %380 = vmatpush1.msra.mxu0 %v128
    %381 = vmatprep.subr.mxu0 0.0
    %382 = vmatpush1.msra.mxu0 %v129
    %383 = vmatprep.subr.mxu0 0.0
    %384 = vmatpush1.msra.mxu0 %v130
    %385 = vmatprep.subr.mxu0 0.0
    %386 = vmatpush1.msra.mxu0 %v131
    %387 = vmatprep.subr.mxu0 0.0
    %388 = vmatpush1.msra.mxu0 %v132
    %389 = vmatprep.subr.mxu0 0.0
    %390 = vmatpush1.msra.mxu0 %v133
    %391 = vmatprep.subr.mxu0 0.0
    %392 = vmatpush1.msra.mxu0 %v134
    %393 = vmatprep.subr.mxu0 0.0
    %394 = vmatpush1.msra.mxu0 0.0
    %395 = vmatprep.subr.mxu0 0.0
    %396 = vmatpush1.msra.mxu0 0.0
    %397 = vmatprep.subr.mxu0 0.0
    %398 = vmatpush1.msra.mxu0 0.0
    %399 = vmatprep.subr.mxu0 0.0
    %400 = vmatpush1.msra.mxu0 0.0
    %401 = vmatprep.subr.mxu0 0.0
    %402 = vmatpush1.msra.mxu0 0.0
    %403 = vmatprep.subr.mxu0 0.0
    %404 = vmatpush1.msra.mxu0 0.0
    %405 = vmatprep.subr.mxu0 0.0
    %406 = vmatpush1.msra.mxu0 0.0
    %407 = vmatprep.subr.mxu0 0.0
    %408 = vmatpush1.msra.mxu0 0.0
    %409 = vmatprep.subr.mxu0 0.0
    %410 = vmatpush1.msra.mxu0 0.0
    %411 = vmatprep.subr.mxu0 0.0
    %412 = vmatpush1.msra.mxu0 0.0
    %413 = vmatprep.subr.mxu0 0.0
    %414 = vmatpush1.msra.mxu0 0.0
    %415 = vmatprep.subr.mxu0 0.0
    %416 = vmatpush1.msra.mxu0 0.0
    %417 = vmatprep.subr.mxu0 0.0
    %418 = vmatpush1.msra.mxu0 0.0
    %419 = vmatprep.subr.mxu0 0.0
    %420 = vmatpush1.msra.mxu0 0.0
    %421 = vmatprep.subr.mxu0 0.0
    %422 = vmatpush1.msra.mxu0 0.0
    %423 = vmatprep.subr.mxu0 0.0
    %424 = vmatpush1.msra.mxu0 0.0
    %425 = vmatprep.subr.mxu0 0.0
    %426 = vmatpush1.msra.mxu0 0.0
    %427 = vmatprep.subr.mxu0 0.0
    %428 = vmatpush1.msra.mxu0 0.0
    %429 = vmatprep.subr.mxu0 0.0
    %430 = vmatpush1.msra.mxu0 0.0
    %431 = vmatprep.subr.mxu0 0.0
    %432 = vmatpush1.msra.mxu0 0.0
    %433 = vmatprep.subr.mxu0 0.0
    %434 = vmatpush1.msra.mxu0 0.0
    %435 = vmatprep.subr.mxu0 0.0
    %436 = vmatpush1.msra.mxu0 0.0
    %437 = vmatprep.subr.mxu0 0.0
    %438 = vmatpush1.msra.mxu0 0.0
    %439 = vmatprep.subr.mxu0 0.0
    %440 = vmatpush1.msra.mxu0 0.0
    %441 = vmatprep.mubr.f32.mxu0 0.0
    %442 = vmatmul.mubr.f32.gmra.mrb[0].mxu0 %v375
    %v443 = vpop.f32.mrb[0].mxu0
    %v444 = vadd.f32 0.0, %v443
    %v445 = vpop.f32.mrb[0].mxu0
    %446 = vdwg.mxu0
    %v447 = vadd.f32 %v123, %v444
    %v448 = vtanh.pop %v447
    %v450 = vsel %vm136, %v448, 0
    %452 = vmatprep.subr.mxu0 0.0
    %453 = vmatpush1.msra.mxu0 %v127
    %454 = vmatprep.subr.mxu0 0.0
    %455 = vmatpush1.msra.mxu0 %v128
    %456 = vmatprep.subr.mxu0 0.0
    %457 = vmatpush1.msra.mxu0 %v129
    %458 = vmatprep.subr.mxu0 0.0
    %459 = vmatpush1.msra.mxu0 %v130
    %460 = vmatprep.subr.mxu0 0.0
    %461 = vmatpush1.msra.mxu0 %v131
    %462 = vmatprep.subr.mxu0 0.0
    %463 = vmatpush1.msra.mxu0 %v132
    %464 = vmatprep.subr.mxu0 0.0
    %465 = vmatpush1.msra.mxu0 %v133
    %466 = vmatprep.subr.mxu0 0.0
    %467 = vmatpush1.msra.mxu0 %v134
    %468 = vmatprep.subr.mxu0 0.0
    %469 = vmatpush1.msra.mxu0 0.0
    %470 = vmatprep.subr.mxu0 0.0
    %471 = vmatpush1.msra.mxu0 0.0
    %472 = vmatprep.subr.mxu0 0.0
    %473 = vmatpush1.msra.mxu0 0.0
    %474 = vmatprep.subr.mxu0 0.0
    %475 = vmatpush1.msra.mxu0 0.0
    %476 = vmatprep.subr.mxu0 0.0
    %477 = vmatpush1.msra.mxu0 0.0
    %478 = vmatprep.subr.mxu0 0.0
    %479 = vmatpush1.msra.mxu0 0.0
    %480 = vmatprep.subr.mxu0 0.0
    %481 = vmatpush1.msra.mxu0 0.0
    %482 = vmatprep.subr.mxu0 0.0
    %483 = vmatpush1.msra.mxu0 0.0
    %484 = vmatprep.subr.mxu0 0.0
    %485 = vmatpush1.msra.mxu0 0.0
    %486 = vmatprep.subr.mxu0 0.0
    %487 = vmatpush1.msra.mxu0 0.0
    %488 = vmatprep.subr.mxu0 0.0
    %489 = vmatpush1.msra.mxu0 0.0
    %490 = vmatprep.subr.mxu0 0.0
    %491 = vmatpush1.msra.mxu0 0.0
    %492 = vmatprep.subr.mxu0 0.0
    %493 = vmatpush1.msra.mxu0 0.0
    %494 = vmatprep.subr.mxu0 0.0
    %495 = vmatpush1.msra.mxu0 0.0
    %496 = vmatprep.subr.mxu0 0.0
    %497 = vmatpush1.msra.mxu0 0.0
    %498 = vmatprep.subr.mxu0 0.0
    %499 = vmatpush1.msra.mxu0 0.0
    %500 = vmatprep.subr.mxu0 0.0
    %501 = vmatpush1.msra.mxu0 0.0
    %502 = vmatprep.subr.mxu0 0.0
    %503 = vmatpush1.msra.mxu0 0.0
    %504 = vmatprep.subr.mxu0 0.0
    %505 = vmatpush1.msra.mxu0 0.0
    %506 = vmatprep.subr.mxu0 0.0
    %507 = vmatpush1.msra.mxu0 0.0
    %508 = vmatprep.subr.mxu0 0.0
    %509 = vmatpush1.msra.mxu0 0.0
    %510 = vmatprep.subr.mxu0 0.0
    %511 = vmatpush1.msra.mxu0 0.0
    %512 = vmatprep.subr.mxu0 0.0
    %513 = vmatpush1.msra.mxu0 0.0
    %514 = vmatprep.subr.mxu0 0.0
    %515 = vmatpush1.msra.mxu0 0.0
    %516 = vmatprep.mubr.f32.mxu0 0.0
    %517 = vmatmul.mubr.f32.gmra.mrb[0].mxu0 %v450
    %v518 = vpop.f32.mrb[0].mxu0
    %v519 = vadd.f32 0.0, %v518
    %v520 = vpop.f32.mrb[0].mxu0
    %521 = vdwg.mxu0
    %v523 = vrot.slane %v519, 6
    %v525 = vadd.f32 %v126, %v523
    %v526 = vtanh.pop %v525
    %v528 = vrot.slane %v526, 2
    %v529 = vsel %vm136, %v528, 0
    %531 = vmatprep.subr.mxu0 0.0
    %532 = vmatpush1.msra.mxu0 %v127
    %533 = vmatprep.subr.mxu0 0.0
    %534 = vmatpush1.msra.mxu0 %v128
    %535 = vmatprep.subr.mxu0 0.0
    %536 = vmatpush1.msra.mxu0 %v129
    %537 = vmatprep.subr.mxu0 0.0
    %538 = vmatpush1.msra.mxu0 %v130
    %539 = vmatprep.subr.mxu0 0.0
    %540 = vmatpush1.msra.mxu0 %v131
    %541 = vmatprep.subr.mxu0 0.0
    %542 = vmatpush1.msra.mxu0 %v132
    %543 = vmatprep.subr.mxu0 0.0
    %544 = vmatpush1.msra.mxu0 %v133
    %545 = vmatprep.subr.mxu0 0.0
    %546 = vmatpush1.msra.mxu0 %v134
    %547 = vmatprep.subr.mxu0 0.0
    %548 = vmatpush1.msra.mxu0 0.0
    %549 = vmatprep.subr.mxu0 0.0
    %550 = vmatpush1.msra.mxu0 0.0
    %551 = vmatprep.subr.mxu0 0.0
    %552 = vmatpush1.msra.mxu0 0.0
    %553 = vmatprep.subr.mxu0 0.0
    %554 = vmatpush1.msra.mxu0 0.0
    %555 = vmatprep.subr.mxu0 0.0
    %556 = vmatpush1.msra.mxu0 0.0
    %557 = vmatprep.subr.mxu0 0.0
    %558 = vmatpush1.msra.mxu0 0.0
    %559 = vmatprep.subr.mxu0 0.0
    %560 = vmatpush1.msra.mxu0 0.0
    %561 = vmatprep.subr.mxu0 0.0
    %562 = vmatpush1.msra.mxu0 0.0
    %563 = vmatprep.subr.mxu0 0.0
    %564 = vmatpush1.msra.mxu0 0.0
    %565 = vmatprep.subr.mxu0 0.0
    %566 = vmatpush1.msra.mxu0 0.0
    %567 = vmatprep.subr.mxu0 0.0
    %568 = vmatpush1.msra.mxu0 0.0
    %569 = vmatprep.subr.mxu0 0.0
    %570 = vmatpush1.msra.mxu0 0.0
    %571 = vmatprep.subr.mxu0 0.0
    %572 = vmatpush1.msra.mxu0 0.0
    %573 = vmatprep.subr.mxu0 0.0
    %574 = vmatpush1.msra.mxu0 0.0
    %575 = vmatprep.subr.mxu0 0.0
    %576 = vmatpush1.msra.mxu0 0.0
    %577 = vmatprep.subr.mxu0 0.0
    %578 = vmatpush1.msra.mxu0 0.0
    %579 = vmatprep.subr.mxu0 0.0
    %580 = vmatpush1.msra.mxu0 0.0
    %581 = vmatprep.subr.mxu0 0.0
    %582 = vmatpush1.msra.mxu0 0.0
    %583 = vmatprep.subr.mxu0 0.0
    %584 = vmatpush1.msra.mxu0 0.0
    %585 = vmatprep.subr.mxu0 0.0
    %586 = vmatpush1.msra.mxu0 0.0
    %587 = vmatprep.subr.mxu0 0.0
    %588 = vmatpush1.msra.mxu0 0.0
    %589 = vmatprep.subr.mxu0 0.0
    %590 = vmatpush1.msra.mxu0 0.0
    %591 = vmatprep.subr.mxu0 0.0
    %592 = vmatpush1.msra.mxu0 0.0
    %593 = vmatprep.subr.mxu0 0.0
    %594 = vmatpush1.msra.mxu0 0.0
    %595 = vmatprep.mubr.f32.mxu0 0.0
    %596 = vmatmul.mubr.f32.gmra.mrb[0].mxu0 %v529
    %v597 = vpop.f32.mrb[0].mxu0
    %v598 = vadd.f32 0.0, %v597
    %v599 = vpop.f32.mrb[0].mxu0
    %600 = vdwg.mxu0
    %v602 = vrot.slane %v598, 4
    %v604 = vadd.f32 %v123, %v602
    %v605 = vtanh.pop %v604
    %v607 = vrot.slane %v605, 4
    %v608 = vsel %vm136, %v607, 0
    %610 = vmatprep.subr.mxu0 0.0
    %611 = vmatpush1.msra.mxu0 %v127
    %612 = vmatprep.subr.mxu0 0.0
    %613 = vmatpush1.msra.mxu0 %v128
    %614 = vmatprep.subr.mxu0 0.0
    %615 = vmatpush1.msra.mxu0 %v129
    %616 = vmatprep.subr.mxu0 0.0
    %617 = vmatpush1.msra.mxu0 %v130
    %618 = vmatprep.subr.mxu0 0.0
    %619 = vmatpush1.msra.mxu0 %v131
    %620 = vmatprep.subr.mxu0 0.0
    %621 = vmatpush1.msra.mxu0 %v132
    %622 = vmatprep.subr.mxu0 0.0
    %623 = vmatpush1.msra.mxu0 %v133
    %624 = vmatprep.subr.mxu0 0.0
    %625 = vmatpush1.msra.mxu0 %v134
    %626 = vmatprep.subr.mxu0 0.0
    %627 = vmatpush1.msra.mxu0 0.0
    %628 = vmatprep.subr.mxu0 0.0
    %629 = vmatpush1.msra.mxu0 0.0
    %630 = vmatprep.subr.mxu0 0.0
    %631 = vmatpush1.msra.mxu0 0.0
    %632 = vmatprep.subr.mxu0 0.0
    %633 = vmatpush1.msra.mxu0 0.0
    %634 = vmatprep.subr.mxu0 0.0
    %635 = vmatpush1.msra.mxu0 0.0
    %636 = vmatprep.subr.mxu0 0.0
    %637 = vmatpush1.msra.mxu0 0.0
    %638 = vmatprep.subr.mxu0 0.0
    %639 = vmatpush1.msra.mxu0 0.0
    %640 = vmatprep.subr.mxu0 0.0
    %641 = vmatpush1.msra.mxu0 0.0
    %642 = vmatprep.subr.mxu0 0.0
    %643 = vmatpush1.msra.mxu0 0.0
    %644 = vmatprep.subr.mxu0 0.0
    %645 = vmatpush1.msra.mxu0 0.0
    %646 = vmatprep.subr.mxu0 0.0
    %647 = vmatpush1.msra.mxu0 0.0
    %648 = vmatprep.subr.mxu0 0.0
    %649 = vmatpush1.msra.mxu0 0.0
    %650 = vmatprep.subr.mxu0 0.0
    %651 = vmatpush1.msra.mxu0 0.0
    %652 = vmatprep.subr.mxu0 0.0
    %653 = vmatpush1.msra.mxu0 0.0
    %654 = vmatprep.subr.mxu0 0.0
    %655 = vmatpush1.msra.mxu0 0.0
    %656 = vmatprep.subr.mxu0 0.0
    %657 = vmatpush1.msra.mxu0 0.0
    %658 = vmatprep.subr.mxu0 0.0
    %659 = vmatpush1.msra.mxu0 0.0
    %660 = vmatprep.subr.mxu0 0.0
    %661 = vmatpush1.msra.mxu0 0.0
    %662 = vmatprep.subr.mxu0 0.0
    %663 = vmatpush1.msra.mxu0 0.0
    %664 = vmatprep.subr.mxu0 0.0
    %665 = vmatpush1.msra.mxu0 0.0
    %666 = vmatprep.subr.mxu0 0.0
    %667 = vmatpush1.msra.mxu0 0.0
    %668 = vmatprep.subr.mxu0 0.0
    %669 = vmatpush1.msra.mxu0 0.0
    %670 = vmatprep.subr.mxu0 0.0
    %671 = vmatpush1.msra.mxu0 0.0
    %672 = vmatprep.subr.mxu0 0.0
    %673 = vmatpush1.msra.mxu0 0.0
    %674 = vmatprep.mubr.f32.mxu0 0.0
    %675 = vmatmul.mubr.f32.gmra.mrb[0].mxu0 %v608
    %v676 = vpop.f32.mrb[0].mxu0
    %v677 = vadd.f32 0.0, %v676
    %v678 = vpop.f32.mrb[0].mxu0
    %679 = vdwg.mxu0
    %v681 = vrot.slane %v677, 2
    %v683 = vadd.f32 %v126, %v681
    %v684 = vtanh.pop %v683
    %vm685 = vcmask 1041408
    %v686 = vsel %vm685, %v135, %v214
    %vm687 = vcmask 1043456
    %v688 = vsel %vm687, %v686, %v293
    %vm689 = vcmask 1045504
    %v690 = vsel %vm689, %v688, %v372
    %v691 = vsel %vm685, %v448, %v526
    %v692 = vsel %vm687, %v691, %v605
    %v693 = vsel %vm689, %v692, %v684
    %v695 = vrot.slane %v684, 6
    %v697 = vrot.slane %v605, 2
    %v699 = vrot.slane %v526, 6
    %v701 = vrot.slane %v448, 2
    %v704 = vrot.slane %v293, 2
    %v706 = vrot.slane %v214, 6
    %v708 = vrot.slane %v135, 2
    %v710 = vsel %vm685, %v695, %v697
    %v711 = vsel %vm687, %v710, %v699
    %v712 = vsel %vm689, %v711, %v701
    %v713 = vsel %vm685, %v374, %v704
    %v714 = vsel %vm687, %v713, %v706
    %v715 = vsel %vm689, %v714, %v708
    %v716 = vsel %vm115, %v690, %v712
    %v717 = vsel %vm115, %v693, %v715
    %v718 = vld [vmem:[%s4] sm:$0xff]
    %v719 = vld [vmem:[%s4 + $0x8] sm:$0xff]
    %v720 = vld [vmem:[%s4 + $0x10] sm:$0xff]
    %v721 = vld [vmem:[%s4 + $0x18] sm:$0xff]
    %v722 = vld [vmem:[%s4 + $0x20] sm:$0xff]
    %v723 = vld [vmem:[%s4 + $0x28] sm:$0xff]
    %v724 = vld [vmem:[%s4 + $0x30] sm:$0xff]
    %v725 = vld [vmem:[%s4 + $0x38] sm:$0xff]
    %v726 = vld [vmem:[#allocation8] sm:$0x1]
    %v728 = vlaneseq
    %v729 = vshrl.u32 %v728, 7
    %v730 = vsub.s32 0, %v729
    %v731 = vrot.slane %v726, %v730
    %v734 = vsel %vm136, %v716, 0
    %v737 = vsel %vm136, %v717, 0
    %739 = vmatprep.subr.mxu0 0.0
    %740 = vmatpush1.msra.mxu0 %v718
    %741 = vmatprep.subr.mxu0 0.0
    %742 = vmatpush1.msra.mxu0 %v719
    %743 = vmatprep.subr.mxu0 0.0
    %744 = vmatpush1.msra.mxu0 %v720
    %745 = vmatprep.subr.mxu0 0.0
    %746 = vmatpush1.msra.mxu0 %v721
    %747 = vmatprep.subr.mxu0 0.0
    %748 = vmatpush1.msra.mxu0 %v722
    %749 = vmatprep.subr.mxu0 0.0
    %750 = vmatpush1.msra.mxu0 %v723
    %751 = vmatprep.subr.mxu0 0.0
    %752 = vmatpush1.msra.mxu0 %v724
    %753 = vmatprep.subr.mxu0 0.0
    %754 = vmatpush1.msra.mxu0 %v725
    %755 = vmatprep.subr.mxu0 0.0
    %756 = vmatpush1.msra.mxu0 0.0
    %757 = vmatprep.subr.mxu0 0.0
    %758 = vmatpush1.msra.mxu0 0.0
    %759 = vmatprep.subr.mxu0 0.0
    %760 = vmatpush1.msra.mxu0 0.0
    %761 = vmatprep.subr.mxu0 0.0
    %762 = vmatpush1.msra.mxu0 0.0
    %763 = vmatprep.subr.mxu0 0.0
    %764 = vmatpush1.msra.mxu0 0.0
    %765 = vmatprep.subr.mxu0 0.0
    %766 = vmatpush1.msra.mxu0 0.0
    %767 = vmatprep.subr.mxu0 0.0
    %768 = vmatpush1.msra.mxu0 0.0
    %769 = vmatprep.subr.mxu0 0.0
    %770 = vmatpush1.msra.mxu0 0.0
    %771 = vmatprep.subr.mxu0 0.0
    %772 = vmatpush1.msra.mxu0 0.0
    %773 = vmatprep.subr.mxu0 0.0
    %774 = vmatpush1.msra.mxu0 0.0
    %775 = vmatprep.subr.mxu0 0.0
    %776 = vmatpush1.msra.mxu0 0.0
    %777 = vmatprep.subr.mxu0 0.0
    %778 = vmatpush1.msra.mxu0 0.0
    %779 = vmatprep.subr.mxu0 0.0
    %780 = vmatpush1.msra.mxu0 0.0
    %781 = vmatprep.subr.mxu0 0.0
    %782 = vmatpush1.msra.mxu0 0.0
    %783 = vmatprep.subr.mxu0 0.0
    %784 = vmatpush1.msra.mxu0 0.0
    %785 = vmatprep.subr.mxu0 0.0
    %786 = vmatpush1.msra.mxu0 0.0
    %787 = vmatprep.subr.mxu0 0.0
    %788 = vmatpush1.msra.mxu0 0.0
    %789 = vmatprep.subr.mxu0 0.0
    %790 = vmatpush1.msra.mxu0 0.0
    %791 = vmatprep.subr.mxu0 0.0
    %792 = vmatpush1.msra.mxu0 0.0
    %793 = vmatprep.subr.mxu0 0.0
    %794 = vmatpush1.msra.mxu0 0.0
    %795 = vmatprep.subr.mxu0 0.0
    %796 = vmatpush1.msra.mxu0 0.0
    %797 = vmatprep.subr.mxu0 0.0
    %798 = vmatpush1.msra.mxu0 0.0
    %799 = vmatprep.subr.mxu0 0.0
    %800 = vmatpush1.msra.mxu0 0.0
    %801 = vmatprep.subr.mxu0 0.0
    %802 = vmatpush1.msra.mxu0 0.0
    %803 = vmatprep.mubr.f32.mxu0 0.0
    %804 = vmatmul.mubr.f32.gmra.mrb[0].mxu0 %v734
    %v805 = vpop.f32.mrb[0].mxu0
    %v806 = vadd.f32 %v731, %v805
    %v807 = vpop.f32.mrb[0].mxu0
    %808 = vmatprep.mubr.f32.mxu0 0.0
    %809 = vmatmul.mubr.f32.gmra.mrb[0].mxu0 %v737
    %v810 = vpop.f32.mrb[0].mxu0
    %v811 = vadd.f32 %v731, %v810
    %v812 = vpop.f32.mrb[0].mxu0
    %813 = vdwg.mxu0
    %v815 = vrot.slane %v811, 6
    %v817 = vsel %vm115, %v806, %v815
    %v818 = vrot.slane %v811, 2
    %v820 = vsel %vm115, %v806, %v818
    %v822 = vrot.slane %v806, 6
    %v824 = vsel %vm115, %v811, %v822
    %v825 = vrot.slane %v806, 2
    %v827 = vsel %vm115, %v811, %v825
    %v828 = vld [vmem:[#allocation7] sm:$0xff]
    %v829 = vld [vmem:[#allocation7 + $0x8] sm:$0xff]
    %v830 = vld [vmem:[#allocation7 + $0x10] sm:$0xff]
    %v831 = vld [vmem:[#allocation7 + $0x18] sm:$0xff]
    %v832 = vld [vmem:[#allocation7 + $0x20] sm:$0xff]
    %v833 = vld [vmem:[#allocation7 + $0x28] sm:$0xff]
    %v834 = vld [vmem:[#allocation7 + $0x30] sm:$0xff]
    %v835 = vld [vmem:[#allocation7 + $0x38] sm:$0xff]
    %v836 = vtanh.pop %v817
    %v838 = vsel %vm136, %v836, 0
    %840 = vmatprep.subr.mxu0 0.0
    %841 = vmatpush1.msra.mxu0 %v828
    %842 = vmatprep.subr.mxu0 0.0
    %843 = vmatpush1.msra.mxu0 %v829
    %844 = vmatprep.subr.mxu0 0.0
    %845 = vmatpush1.msra.mxu0 %v830
    %846 = vmatprep.subr.mxu0 0.0
    %847 = vmatpush1.msra.mxu0 %v831
    %848 = vmatprep.subr.mxu0 0.0
    %849 = vmatpush1.msra.mxu0 %v832
    %850 = vmatprep.subr.mxu0 0.0
    %851 = vmatpush1.msra.mxu0 %v833
    %852 = vmatprep.subr.mxu0 0.0
    %853 = vmatpush1.msra.mxu0 %v834
    %854 = vmatprep.subr.mxu0 0.0
    %855 = vmatpush1.msra.mxu0 %v835
    %856 = vmatprep.subr.mxu0 0.0
    %857 = vmatpush1.msra.mxu0 0.0
    %858 = vmatprep.subr.mxu0 0.0
    %859 = vmatpush1.msra.mxu0 0.0
    %860 = vmatprep.subr.mxu0 0.0
    %861 = vmatpush1.msra.mxu0 0.0
    %862 = vmatprep.subr.mxu0 0.0
    %863 = vmatpush1.msra.mxu0 0.0
    %864 = vmatprep.subr.mxu0 0.0
    %865 = vmatpush1.msra.mxu0 0.0
    %866 = vmatprep.subr.mxu0 0.0
    %867 = vmatpush1.msra.mxu0 0.0
    %868 = vmatprep.subr.mxu0 0.0
    %869 = vmatpush1.msra.mxu0 0.0
    %870 = vmatprep.subr.mxu0 0.0
    %871 = vmatpush1.msra.mxu0 0.0
    %872 = vmatprep.subr.mxu0 0.0
    %873 = vmatpush1.msra.mxu0 0.0
    %874 = vmatprep.subr.mxu0 0.0
    %875 = vmatpush1.msra.mxu0 0.0
    %876 = vmatprep.subr.mxu0 0.0
    %877 = vmatpush1.msra.mxu0 0.0
    %878 = vmatprep.subr.mxu0 0.0
    %879 = vmatpush1.msra.mxu0 0.0
    %880 = vmatprep.subr.mxu0 0.0
    %881 = vmatpush1.msra.mxu0 0.0
    %882 = vmatprep.subr.mxu0 0.0
    %883 = vmatpush1.msra.mxu0 0.0
    %884 = vmatprep.subr.mxu0 0.0
    %885 = vmatpush1.msra.mxu0 0.0
    %886 = vmatprep.subr.mxu0 0.0
    %887 = vmatpush1.msra.mxu0 0.0
    %888 = vmatprep.subr.mxu0 0.0
    %889 = vmatpush1.msra.mxu0 0.0
    %890 = vmatprep.subr.mxu0 0.0
    %891 = vmatpush1.msra.mxu0 0.0
    %892 = vmatprep.subr.mxu0 0.0
    %893 = vmatpush1.msra.mxu0 0.0
    %894 = vmatprep.subr.mxu0 0.0
    %895 = vmatpush1.msra.mxu0 0.0
    %896 = vmatprep.subr.mxu0 0.0
    %897 = vmatpush1.msra.mxu0 0.0
    %898 = vmatprep.subr.mxu0 0.0
    %899 = vmatpush1.msra.mxu0 0.0
    %900 = vmatprep.subr.mxu0 0.0
    %901 = vmatpush1.msra.mxu0 0.0
    %902 = vmatprep.subr.mxu0 0.0
    %903 = vmatpush1.msra.mxu0 0.0
    %904 = vmatprep.mubr.f32.mxu0 0.0
    %905 = vmatmul.mubr.f32.gmra.mrb[0].mxu0 %v838
    %v906 = vpop.f32.mrb[0].mxu0
    %v907 = vadd.f32 0.0, %v906
    %v908 = vpop.f32.mrb[0].mxu0
    %909 = vdwg.mxu0
    %v911 = vrot.slane %v907, 6
    %v913 = vadd.f32 %v820, %v911
    %v914 = vtanh.pop %v913
    %v916 = vrot.slane %v914, 2
    %v917 = vsel %vm136, %v916, 0
    %919 = vmatprep.subr.mxu0 0.0
    %920 = vmatpush1.msra.mxu0 %v828
    %921 = vmatprep.subr.mxu0 0.0
    %922 = vmatpush1.msra.mxu0 %v829
    %923 = vmatprep.subr.mxu0 0.0
    %924 = vmatpush1.msra.mxu0 %v830
    %925 = vmatprep.subr.mxu0 0.0
    %926 = vmatpush1.msra.mxu0 %v831
    %927 = vmatprep.subr.mxu0 0.0
    %928 = vmatpush1.msra.mxu0 %v832
    %929 = vmatprep.subr.mxu0 0.0
    %930 = vmatpush1.msra.mxu0 %v833
    %931 = vmatprep.subr.mxu0 0.0
    %932 = vmatpush1.msra.mxu0 %v834
    %933 = vmatprep.subr.mxu0 0.0
    %934 = vmatpush1.msra.mxu0 %v835
    %935 = vmatprep.subr.mxu0 0.0
    %936 = vmatpush1.msra.mxu0 0.0
    %937 = vmatprep.subr.mxu0 0.0
    %938 = vmatpush1.msra.mxu0 0.0
    %939 = vmatprep.subr.mxu0 0.0
    %940 = vmatpush1.msra.mxu0 0.0
    %941 = vmatprep.subr.mxu0 0.0
    %942 = vmatpush1.msra.mxu0 0.0
    %943 = vmatprep.subr.mxu0 0.0
    %944 = vmatpush1.msra.mxu0 0.0
    %945 = vmatprep.subr.mxu0 0.0
    %946 = vmatpush1.msra.mxu0 0.0
    %947 = vmatprep.subr.mxu0 0.0
    %948 = vmatpush1.msra.mxu0 0.0
    %949 = vmatprep.subr.mxu0 0.0
    %950 = vmatpush1.msra.mxu0 0.0
    %951 = vmatprep.subr.mxu0 0.0
    %952 = vmatpush1.msra.mxu0 0.0
    %953 = vmatprep.subr.mxu0 0.0
    %954 = vmatpush1.msra.mxu0 0.0
    %955 = vmatprep.subr.mxu0 0.0
    %956 = vmatpush1.msra.mxu0 0.0
    %957 = vmatprep.subr.mxu0 0.0
    %958 = vmatpush1.msra.mxu0 0.0
    %959 = vmatprep.subr.mxu0 0.0
    %960 = vmatpush1.msra.mxu0 0.0
    %961 = vmatprep.subr.mxu0 0.0
    %962 = vmatpush1.msra.mxu0 0.0
    %963 = vmatprep.subr.mxu0 0.0
    %964 = vmatpush1.msra.mxu0 0.0
    %965 = vmatprep.subr.mxu0 0.0
    %966 = vmatpush1.msra.mxu0 0.0
    %967 = vmatprep.subr.mxu0 0.0
    %968 = vmatpush1.msra.mxu0 0.0
    %969 = vmatprep.subr.mxu0 0.0
    %970 = vmatpush1.msra.mxu0 0.0
    %971 = vmatprep.subr.mxu0 0.0
    %972 = vmatpush1.msra.mxu0 0.0
    %973 = vmatprep.subr.mxu0 0.0
    %974 = vmatpush1.msra.mxu0 0.0
    %975 = vmatprep.subr.mxu0 0.0
    %976 = vmatpush1.msra.mxu0 0.0
    %977 = vmatprep.subr.mxu0 0.0
    %978 = vmatpush1.msra.mxu0 0.0
    %979 = vmatprep.subr.mxu0 0.0
    %980 = vmatpush1.msra.mxu0 0.0
    %981 = vmatprep.subr.mxu0 0.0
    %982 = vmatpush1.msra.mxu0 0.0
    %983 = vmatprep.mubr.f32.mxu0 0.0
    %984 = vmatmul.mubr.f32.gmra.mrb[0].mxu0 %v917
    %v985 = vpop.f32.mrb[0].mxu0
    %v986 = vadd.f32 0.0, %v985
    %v987 = vpop.f32.mrb[0].mxu0
    %988 = vdwg.mxu0
    %v990 = vrot.slane %v986, 4
    %v992 = vadd.f32 %v817, %v990
    %v993 = vtanh.pop %v992
    %v995 = vrot.slane %v993, 4
    %v996 = vsel %vm136, %v995, 0
    %998 = vmatprep.subr.mxu0 0.0
    %999 = vmatpush1.msra.mxu0 %v828
    %1000 = vmatprep.subr.mxu0 0.0
    %1001 = vmatpush1.msra.mxu0 %v829
    %1002 = vmatprep.subr.mxu0 0.0
    %1003 = vmatpush1.msra.mxu0 %v830
    %1004 = vmatprep.subr.mxu0 0.0
    %1005 = vmatpush1.msra.mxu0 %v831
    %1006 = vmatprep.subr.mxu0 0.0
    %1007 = vmatpush1.msra.mxu0 %v832
    %1008 = vmatprep.subr.mxu0 0.0
    %1009 = vmatpush1.msra.mxu0 %v833
    %1010 = vmatprep.subr.mxu0 0.0
    %1011 = vmatpush1.msra.mxu0 %v834
    %1012 = vmatprep.subr.mxu0 0.0
    %1013 = vmatpush1.msra.mxu0 %v835
    %1014 = vmatprep.subr.mxu0 0.0
    %1015 = vmatpush1.msra.mxu0 0.0
    %1016 = vmatprep.subr.mxu0 0.0
    %1017 = vmatpush1.msra.mxu0 0.0
    %1018 = vmatprep.subr.mxu0 0.0
    %1019 = vmatpush1.msra.mxu0 0.0
    %1020 = vmatprep.subr.mxu0 0.0
    %1021 = vmatpush1.msra.mxu0 0.0
    %1022 = vmatprep.subr.mxu0 0.0
    %1023 = vmatpush1.msra.mxu0 0.0
    %1024 = vmatprep.subr.mxu0 0.0
    %1025 = vmatpush1.msra.mxu0 0.0
    %1026 = vmatprep.subr.mxu0 0.0
    %1027 = vmatpush1.msra.mxu0 0.0
    %1028 = vmatprep.subr.mxu0 0.0
    %1029 = vmatpush1.msra.mxu0 0.0
    %1030 = vmatprep.subr.mxu0 0.0
    %1031 = vmatpush1.msra.mxu0 0.0
    %1032 = vmatprep.subr.mxu0 0.0
    %1033 = vmatpush1.msra.mxu0 0.0
    %1034 = vmatprep.subr.mxu0 0.0
    %1035 = vmatpush1.msra.mxu0 0.0
    %1036 = vmatprep.subr.mxu0 0.0
    %1037 = vmatpush1.msra.mxu0 0.0
    %1038 = vmatprep.subr.mxu0 0.0
    %1039 = vmatpush1.msra.mxu0 0.0
    %1040 = vmatprep.subr.mxu0 0.0
    %1041 = vmatpush1.msra.mxu0 0.0
    %1042 = vmatprep.subr.mxu0 0.0
    %1043 = vmatpush1.msra.mxu0 0.0
    %1044 = vmatprep.subr.mxu0 0.0
    %1045 = vmatpush1.msra.mxu0 0.0
    %1046 = vmatprep.subr.mxu0 0.0
    %1047 = vmatpush1.msra.mxu0 0.0
    %1048 = vmatprep.subr.mxu0 0.0
    %1049 = vmatpush1.msra.mxu0 0.0
    %1050 = vmatprep.subr.mxu0 0.0
    %1051 = vmatpush1.msra.mxu0 0.0
    %1052 = vmatprep.subr.mxu0 0.0
    %1053 = vmatpush1.msra.mxu0 0.0
    %1054 = vmatprep.subr.mxu0 0.0
    %1055 = vmatpush1.msra.mxu0 0.0
    %1056 = vmatprep.subr.mxu0 0.0
    %1057 = vmatpush1.msra.mxu0 0.0
    %1058 = vmatprep.subr.mxu0 0.0
    %1059 = vmatpush1.msra.mxu0 0.0
    %1060 = vmatprep.subr.mxu0 0.0
    %1061 = vmatpush1.msra.mxu0 0.0
    %1062 = vmatprep.mubr.f32.mxu0 0.0
    %1063 = vmatmul.mubr.f32.gmra.mrb[0].mxu0 %v996
    %v1064 = vpop.f32.mrb[0].mxu0
    %v1065 = vadd.f32 0.0, %v1064
    %v1066 = vpop.f32.mrb[0].mxu0
    %1067 = vdwg.mxu0
    %v1069 = vrot.slane %v1065, 2
    %v1071 = vadd.f32 %v820, %v1069
    %v1072 = vtanh.pop %v1071
    %v1074 = vrot.slane %v1072, 6
    %v1075 = vsel %vm136, %v1074, 0
    %1077 = vmatprep.subr.mxu0 0.0
    %1078 = vmatpush1.msra.mxu0 %v828
    %1079 = vmatprep.subr.mxu0 0.0
    %1080 = vmatpush1.msra.mxu0 %v829
    %1081 = vmatprep.subr.mxu0 0.0
    %1082 = vmatpush1.msra.mxu0 %v830
    %1083 = vmatprep.subr.mxu0 0.0
    %1084 = vmatpush1.msra.mxu0 %v831
    %1085 = vmatprep.subr.mxu0 0.0
    %1086 = vmatpush1.msra.mxu0 %v832
    %1087 = vmatprep.subr.mxu0 0.0
    %1088 = vmatpush1.msra.mxu0 %v833
    %1089 = vmatprep.subr.mxu0 0.0
    %1090 = vmatpush1.msra.mxu0 %v834
    %1091 = vmatprep.subr.mxu0 0.0
    %1092 = vmatpush1.msra.mxu0 %v835
    %1093 = vmatprep.subr.mxu0 0.0
    %1094 = vmatpush1.msra.mxu0 0.0
    %1095 = vmatprep.subr.mxu0 0.0
    %1096 = vmatpush1.msra.mxu0 0.0
    %1097 = vmatprep.subr.mxu0 0.0
    %1098 = vmatpush1.msra.mxu0 0.0
    %1099 = vmatprep.subr.mxu0 0.0
    %1100 = vmatpush1.msra.mxu0 0.0
    %1101 = vmatprep.subr.mxu0 0.0
    %1102 = vmatpush1.msra.mxu0 0.0
    %1103 = vmatprep.subr.mxu0 0.0
    %1104 = vmatpush1.msra.mxu0 0.0
    %1105 = vmatprep.subr.mxu0 0.0
    %1106 = vmatpush1.msra.mxu0 0.0
    %1107 = vmatprep.subr.mxu0 0.0
    %1108 = vmatpush1.msra.mxu0 0.0
    %1109 = vmatprep.subr.mxu0 0.0
    %1110 = vmatpush1.msra.mxu0 0.0
    %1111 = vmatprep.subr.mxu0 0.0
    %1112 = vmatpush1.msra.mxu0 0.0
    %1113 = vmatprep.subr.mxu0 0.0
    %1114 = vmatpush1.msra.mxu0 0.0
    %1115 = vmatprep.subr.mxu0 0.0
    %1116 = vmatpush1.msra.mxu0 0.0
    %1117 = vmatprep.subr.mxu0 0.0
    %1118 = vmatpush1.msra.mxu0 0.0
    %1119 = vmatprep.subr.mxu0 0.0
    %1120 = vmatpush1.msra.mxu0 0.0
    %1121 = vmatprep.subr.mxu0 0.0
    %1122 = vmatpush1.msra.mxu0 0.0
    %1123 = vmatprep.subr.mxu0 0.0
    %1124 = vmatpush1.msra.mxu0 0.0
    %1125 = vmatprep.subr.mxu0 0.0
    %1126 = vmatpush1.msra.mxu0 0.0
    %1127 = vmatprep.subr.mxu0 0.0
    %1128 = vmatpush1.msra.mxu0 0.0
    %1129 = vmatprep.subr.mxu0 0.0
    %1130 = vmatpush1.msra.mxu0 0.0
    %1131 = vmatprep.subr.mxu0 0.0
    %1132 = vmatpush1.msra.mxu0 0.0
    %1133 = vmatprep.subr.mxu0 0.0
    %1134 = vmatpush1.msra.mxu0 0.0
    %1135 = vmatprep.subr.mxu0 0.0
    %1136 = vmatpush1.msra.mxu0 0.0
    %1137 = vmatprep.subr.mxu0 0.0
    %1138 = vmatpush1.msra.mxu0 0.0
    %1139 = vmatprep.subr.mxu0 0.0
    %1140 = vmatpush1.msra.mxu0 0.0
    %1141 = vmatprep.mubr.f32.mxu0 0.0
    %1142 = vmatmul.mubr.f32.gmra.mrb[0].mxu0 %v1075
    %v1143 = vpop.f32.mrb[0].mxu0
    %v1144 = vadd.f32 0.0, %v1143
    %v1145 = vpop.f32.mrb[0].mxu0
    %1146 = vdwg.mxu0
    %v1147 = vadd.f32 %v824, %v1144
    %v1148 = vtanh.pop %v1147
    %v1150 = vsel %vm136, %v1148, 0
    %1152 = vmatprep.subr.mxu0 0.0
    %1153 = vmatpush1.msra.mxu0 %v828
    %1154 = vmatprep.subr.mxu0 0.0
    %1155 = vmatpush1.msra.mxu0 %v829
    %1156 = vmatprep.subr.mxu0 0.0
    %1157 = vmatpush1.msra.mxu0 %v830
    %1158 = vmatprep.subr.mxu0 0.0
    %1159 = vmatpush1.msra.mxu0 %v831
    %1160 = vmatprep.subr.mxu0 0.0
    %1161 = vmatpush1.msra.mxu0 %v832
    %1162 = vmatprep.subr.mxu0 0.0
    %1163 = vmatpush1.msra.mxu0 %v833
    %1164 = vmatprep.subr.mxu0 0.0
    %1165 = vmatpush1.msra.mxu0 %v834
    %1166 = vmatprep.subr.mxu0 0.0
    %1167 = vmatpush1.msra.mxu0 %v835
    %1168 = vmatprep.subr.mxu0 0.0
    %1169 = vmatpush1.msra.mxu0 0.0
    %1170 = vmatprep.subr.mxu0 0.0
    %1171 = vmatpush1.msra.mxu0 0.0
    %1172 = vmatprep.subr.mxu0 0.0
    %1173 = vmatpush1.msra.mxu0 0.0
    %1174 = vmatprep.subr.mxu0 0.0
    %1175 = vmatpush1.msra.mxu0 0.0
    %1176 = vmatprep.subr.mxu0 0.0
    %1177 = vmatpush1.msra.mxu0 0.0
    %1178 = vmatprep.subr.mxu0 0.0
    %1179 = vmatpush1.msra.mxu0 0.0
    %1180 = vmatprep.subr.mxu0 0.0
    %1181 = vmatpush1.msra.mxu0 0.0
    %1182 = vmatprep.subr.mxu0 0.0
    %1183 = vmatpush1.msra.mxu0 0.0
    %1184 = vmatprep.subr.mxu0 0.0
    %1185 = vmatpush1.msra.mxu0 0.0
    %1186 = vmatprep.subr.mxu0 0.0
    %1187 = vmatpush1.msra.mxu0 0.0
    %1188 = vmatprep.subr.mxu0 0.0
    %1189 = vmatpush1.msra.mxu0 0.0
    %1190 = vmatprep.subr.mxu0 0.0
    %1191 = vmatpush1.msra.mxu0 0.0
    %1192 = vmatprep.subr.mxu0 0.0
    %1193 = vmatpush1.msra.mxu0 0.0
    %1194 = vmatprep.subr.mxu0 0.0
    %1195 = vmatpush1.msra.mxu0 0.0
    %1196 = vmatprep.subr.mxu0 0.0
    %1197 = vmatpush1.msra.mxu0 0.0
    %1198 = vmatprep.subr.mxu0 0.0
    %1199 = vmatpush1.msra.mxu0 0.0
    %1200 = vmatprep.subr.mxu0 0.0
    %1201 = vmatpush1.msra.mxu0 0.0
    %1202 = vmatprep.subr.mxu0 0.0
    %1203 = vmatpush1.msra.mxu0 0.0
    %1204 = vmatprep.subr.mxu0 0.0
    %1205 = vmatpush1.msra.mxu0 0.0
    %1206 = vmatprep.subr.mxu0 0.0
    %1207 = vmatpush1.msra.mxu0 0.0
    %1208 = vmatprep.subr.mxu0 0.0
    %1209 = vmatpush1.msra.mxu0 0.0
    %1210 = vmatprep.subr.mxu0 0.0
    %1211 = vmatpush1.msra.mxu0 0.0
    %1212 = vmatprep.subr.mxu0 0.0
    %1213 = vmatpush1.msra.mxu0 0.0
    %1214 = vmatprep.subr.mxu0 0.0
    %1215 = vmatpush1.msra.mxu0 0.0
    %1216 = vmatprep.mubr.f32.mxu0 0.0
    %1217 = vmatmul.mubr.f32.gmra.mrb[0].mxu0 %v1150
    %v1218 = vpop.f32.mrb[0].mxu0
    %v1219 = vadd.f32 0.0, %v1218
    %v1220 = vpop.f32.mrb[0].mxu0
    %1221 = vdwg.mxu0
    %v1223 = vrot.slane %v1219, 6
    %v1225 = vadd.f32 %v827, %v1223
    %v1226 = vtanh.pop %v1225
    %v1228 = vrot.slane %v1226, 2
    %v1229 = vsel %vm136, %v1228, 0
    %1231 = vmatprep.subr.mxu0 0.0
    %1232 = vmatpush1.msra.mxu0 %v828
    %1233 = vmatprep.subr.mxu0 0.0
    %1234 = vmatpush1.msra.mxu0 %v829
    %1235 = vmatprep.subr.mxu0 0.0
    %1236 = vmatpush1.msra.mxu0 %v830
    %1237 = vmatprep.subr.mxu0 0.0
    %1238 = vmatpush1.msra.mxu0 %v831
    %1239 = vmatprep.subr.mxu0 0.0
    %1240 = vmatpush1.msra.mxu0 %v832
    %1241 = vmatprep.subr.mxu0 0.0
    %1242 = vmatpush1.msra.mxu0 %v833
    %1243 = vmatprep.subr.mxu0 0.0
    %1244 = vmatpush1.msra.mxu0 %v834
    %1245 = vmatprep.subr.mxu0 0.0
    %1246 = vmatpush1.msra.mxu0 %v835
    %1247 = vmatprep.subr.mxu0 0.0
    %1248 = vmatpush1.msra.mxu0 0.0
    %1249 = vmatprep.subr.mxu0 0.0
    %1250 = vmatpush1.msra.mxu0 0.0
    %1251 = vmatprep.subr.mxu0 0.0
    %1252 = vmatpush1.msra.mxu0 0.0
    %1253 = vmatprep.subr.mxu0 0.0
    %1254 = vmatpush1.msra.mxu0 0.0
    %1255 = vmatprep.subr.mxu0 0.0
    %1256 = vmatpush1.msra.mxu0 0.0
    %1257 = vmatprep.subr.mxu0 0.0
    %1258 = vmatpush1.msra.mxu0 0.0
    %1259 = vmatprep.subr.mxu0 0.0
    %1260 = vmatpush1.msra.mxu0 0.0
    %1261 = vmatprep.subr.mxu0 0.0
    %1262 = vmatpush1.msra.mxu0 0.0
    %1263 = vmatprep.subr.mxu0 0.0
    %1264 = vmatpush1.msra.mxu0 0.0
    %1265 = vmatprep.subr.mxu0 0.0
    %1266 = vmatpush1.msra.mxu0 0.0
    %1267 = vmatprep.subr.mxu0 0.0
    %1268 = vmatpush1.msra.mxu0 0.0
    %1269 = vmatprep.subr.mxu0 0.0
    %1270 = vmatpush1.msra.mxu0 0.0
    %1271 = vmatprep.subr.mxu0 0.0
    %1272 = vmatpush1.msra.mxu0 0.0
    %1273 = vmatprep.subr.mxu0 0.0
    %1274 = vmatpush1.msra.mxu0 0.0
    %1275 = vmatprep.subr.mxu0 0.0
    %1276 = vmatpush1.msra.mxu0 0.0
    %1277 = vmatprep.subr.mxu0 0.0
    %1278 = vmatpush1.msra.mxu0 0.0
    %1279 = vmatprep.subr.mxu0 0.0
    %1280 = vmatpush1.msra.mxu0 0.0
    %1281 = vmatprep.subr.mxu0 0.0
    %1282 = vmatpush1.msra.mxu0 0.0
    %1283 = vmatprep.subr.mxu0 0.0
    %1284 = vmatpush1.msra.mxu0 0.0
    %1285 = vmatprep.subr.mxu0 0.0
    %1286 = vmatpush1.msra.mxu0 0.0
    %1287 = vmatprep.subr.mxu0 0.0
    %1288 = vmatpush1.msra.mxu0 0.0
    %1289 = vmatprep.subr.mxu0 0.0
    %1290 = vmatpush1.msra.mxu0 0.0
    %1291 = vmatprep.subr.mxu0 0.0
    %1292 = vmatpush1.msra.mxu0 0.0
    %1293 = vmatprep.subr.mxu0 0.0
    %1294 = vmatpush1.msra.mxu0 0.0
    %1295 = vmatprep.mubr.f32.mxu0 0.0
    %1296 = vmatmul.mubr.f32.gmra.mrb[0].mxu0 %v1229
    %v1297 = vpop.f32.mrb[0].mxu0
    %v1298 = vadd.f32 0.0, %v1297
    %v1299 = vpop.f32.mrb[0].mxu0
    %1300 = vdwg.mxu0
    %v1302 = vrot.slane %v1298, 4
    %v1304 = vadd.f32 %v824, %v1302
    %v1305 = vtanh.pop %v1304
    %v1307 = vrot.slane %v1305, 4
    %v1308 = vsel %vm136, %v1307, 0
    %1310 = vmatprep.subr.mxu0 0.0
    %1311 = vmatpush1.msra.mxu0 %v828
    %1312 = vmatprep.subr.mxu0 0.0
    %1313 = vmatpush1.msra.mxu0 %v829
    %1314 = vmatprep.subr.mxu0 0.0
    %1315 = vmatpush1.msra.mxu0 %v830
    %1316 = vmatprep.subr.mxu0 0.0
    %1317 = vmatpush1.msra.mxu0 %v831
    %1318 = vmatprep.subr.mxu0 0.0
    %1319 = vmatpush1.msra.mxu0 %v832
    %1320 = vmatprep.subr.mxu0 0.0
    %1321 = vmatpush1.msra.mxu0 %v833
    %1322 = vmatprep.subr.mxu0 0.0
    %1323 = vmatpush1.msra.mxu0 %v834
    %1324 = vmatprep.subr.mxu0 0.0
    %1325 = vmatpush1.msra.mxu0 %v835
    %1326 = vmatprep.subr.mxu0 0.0
    %1327 = vmatpush1.msra.mxu0 0.0
    %1328 = vmatprep.subr.mxu0 0.0
    %1329 = vmatpush1.msra.mxu0 0.0
    %1330 = vmatprep.subr.mxu0 0.0
    %1331 = vmatpush1.msra.mxu0 0.0
    %1332 = vmatprep.subr.mxu0 0.0
    %1333 = vmatpush1.msra.mxu0 0.0
    %1334 = vmatprep.subr.mxu0 0.0
    %1335 = vmatpush1.msra.mxu0 0.0
    %1336 = vmatprep.subr.mxu0 0.0
    %1337 = vmatpush1.msra.mxu0 0.0
    %1338 = vmatprep.subr.mxu0 0.0
    %1339 = vmatpush1.msra.mxu0 0.0
    %1340 = vmatprep.subr.mxu0 0.0
    %1341 = vmatpush1.msra.mxu0 0.0
    %1342 = vmatprep.subr.mxu0 0.0
    %1343 = vmatpush1.msra.mxu0 0.0
    %1344 = vmatprep.subr.mxu0 0.0
    %1345 = vmatpush1.msra.mxu0 0.0
    %1346 = vmatprep.subr.mxu0 0.0
    %1347 = vmatpush1.msra.mxu0 0.0
    %1348 = vmatprep.subr.mxu0 0.0
    %1349 = vmatpush1.msra.mxu0 0.0
    %1350 = vmatprep.subr.mxu0 0.0
    %1351 = vmatpush1.msra.mxu0 0.0
    %1352 = vmatprep.subr.mxu0 0.0
    %1353 = vmatpush1.msra.mxu0 0.0
    %1354 = vmatprep.subr.mxu0 0.0
    %1355 = vmatpush1.msra.mxu0 0.0
    %1356 = vmatprep.subr.mxu0 0.0
    %1357 = vmatpush1.msra.mxu0 0.0
    %1358 = vmatprep.subr.mxu0 0.0
    %1359 = vmatpush1.msra.mxu0 0.0
    %1360 = vmatprep.subr.mxu0 0.0
    %1361 = vmatpush1.msra.mxu0 0.0
    %1362 = vmatprep.subr.mxu0 0.0
    %1363 = vmatpush1.msra.mxu0 0.0
    %1364 = vmatprep.subr.mxu0 0.0
    %1365 = vmatpush1.msra.mxu0 0.0
    %1366 = vmatprep.subr.mxu0 0.0
    %1367 = vmatpush1.msra.mxu0 0.0
    %1368 = vmatprep.subr.mxu0 0.0
    %1369 = vmatpush1.msra.mxu0 0.0
    %1370 = vmatprep.subr.mxu0 0.0
    %1371 = vmatpush1.msra.mxu0 0.0
    %1372 = vmatprep.subr.mxu0 0.0
    %1373 = vmatpush1.msra.mxu0 0.0
    %1374 = vmatprep.mubr.f32.mxu0 0.0
    %1375 = vmatmul.mubr.f32.gmra.mrb[0].mxu0 %v1308
    %v1376 = vpop.f32.mrb[0].mxu0
    %v1377 = vadd.f32 0.0, %v1376
    %v1378 = vpop.f32.mrb[0].mxu0
    %1379 = vdwg.mxu0
    %v1381 = vrot.slane %v1377, 2
    %v1383 = vadd.f32 %v827, %v1381
    %v1384 = vtanh.pop %v1383
    %v1385 = vrot.slane %v836, 2
    %v1387 = vsel %vm115, %v1384, %v1385
    %v1388 = vld [vmem:[%s7] sm:$0xff]
    %v1389 = vld [vmem:[%s7 + $0x8] sm:$0xff]
    %v1390 = vld [vmem:[%s7 + $0x10] sm:$0xff]
    %v1391 = vld [vmem:[%s7 + $0x18] sm:$0xff]
    %v1392 = vld [vmem:[%s7 + $0x20] sm:$0xff]
    %v1393 = vld [vmem:[%s7 + $0x28] sm:$0xff]
    %v1394 = vld [vmem:[%s7 + $0x30] sm:$0xff]
    %v1395 = vld [vmem:[%s7 + $0x38] sm:$0xff]
    %v1396 = vld [vmem:[%s8] sm:$0x1]
    %v1398 = vlaneseq
    %v1399 = vshrl.u32 %v1398, 7
    %v1400 = vsub.s32 0, %v1399
    %v1401 = vrot.slane %v1396, %v1400
    %v1404 = vrot.slane %v1387, 6
    %v1405 = vsel %vm136, %v1404, 0
    %1407 = vmatprep.subr.mxu0 0.0
    %1408 = vmatpush1.msra.mxu0 %v1388
    %1409 = vmatprep.subr.mxu0 0.0
    %1410 = vmatpush1.msra.mxu0 %v1389
    %1411 = vmatprep.subr.mxu0 0.0
    %1412 = vmatpush1.msra.mxu0 %v1390
    %1413 = vmatprep.subr.mxu0 0.0
    %1414 = vmatpush1.msra.mxu0 %v1391
    %1415 = vmatprep.subr.mxu0 0.0
    %1416 = vmatpush1.msra.mxu0 %v1392
    %1417 = vmatprep.subr.mxu0 0.0
    %1418 = vmatpush1.msra.mxu0 %v1393
    %1419 = vmatprep.subr.mxu0 0.0
    %1420 = vmatpush1.msra.mxu0 %v1394
    %1421 = vmatprep.subr.mxu0 0.0
    %1422 = vmatpush1.msra.mxu0 %v1395
    %1423 = vmatprep.subr.mxu0 0.0
    %1424 = vmatpush1.msra.mxu0 0.0
    %1425 = vmatprep.subr.mxu0 0.0
    %1426 = vmatpush1.msra.mxu0 0.0
    %1427 = vmatprep.subr.mxu0 0.0
    %1428 = vmatpush1.msra.mxu0 0.0
    %1429 = vmatprep.subr.mxu0 0.0
    %1430 = vmatpush1.msra.mxu0 0.0
    %1431 = vmatprep.subr.mxu0 0.0
    %1432 = vmatpush1.msra.mxu0 0.0
    %1433 = vmatprep.subr.mxu0 0.0
    %1434 = vmatpush1.msra.mxu0 0.0
    %1435 = vmatprep.subr.mxu0 0.0
    %1436 = vmatpush1.msra.mxu0 0.0
    %1437 = vmatprep.subr.mxu0 0.0
    %1438 = vmatpush1.msra.mxu0 0.0
    %1439 = vmatprep.subr.mxu0 0.0
    %1440 = vmatpush1.msra.mxu0 0.0
    %1441 = vmatprep.subr.mxu0 0.0
    %1442 = vmatpush1.msra.mxu0 0.0
    %1443 = vmatprep.subr.mxu0 0.0
    %1444 = vmatpush1.msra.mxu0 0.0
    %1445 = vmatprep.subr.mxu0 0.0
    %1446 = vmatpush1.msra.mxu0 0.0
    %1447 = vmatprep.subr.mxu0 0.0
    %1448 = vmatpush1.msra.mxu0 0.0
    %1449 = vmatprep.subr.mxu0 0.0
    %1450 = vmatpush1.msra.mxu0 0.0
    %1451 = vmatprep.subr.mxu0 0.0
    %1452 = vmatpush1.msra.mxu0 0.0
    %1453 = vmatprep.subr.mxu0 0.0
    %1454 = vmatpush1.msra.mxu0 0.0
    %1455 = vmatprep.subr.mxu0 0.0
    %1456 = vmatpush1.msra.mxu0 0.0
    %1457 = vmatprep.subr.mxu0 0.0
    %1458 = vmatpush1.msra.mxu0 0.0
    %1459 = vmatprep.subr.mxu0 0.0
    %1460 = vmatpush1.msra.mxu0 0.0
    %1461 = vmatprep.subr.mxu0 0.0
    %1462 = vmatpush1.msra.mxu0 0.0
    %1463 = vmatprep.subr.mxu0 0.0
    %1464 = vmatpush1.msra.mxu0 0.0
    %1465 = vmatprep.subr.mxu0 0.0
    %1466 = vmatpush1.msra.mxu0 0.0
    %1467 = vmatprep.subr.mxu0 0.0
    %1468 = vmatpush1.msra.mxu0 0.0
    %1469 = vmatprep.subr.mxu0 0.0
    %1470 = vmatpush1.msra.mxu0 0.0
    %1471 = vmatprep.mubr.f32.mxu0 0.0
    %1472 = vmatmul.mubr.f32.gmra.mrb[0].mxu0 %v1405
    %v1473 = vpop.f32.mrb[0].mxu0
    %v1474 = vadd.f32 %v1401, %v1473
    %v1475 = vpop.f32.mrb[0].mxu0
    %1476 = vdwg.mxu0
    %vm1477 = vcmask 74752
    %1478 = vst.msk [vmem:[#allocation10] sm:$0x3] %vm1477, %v1474
    // Predicated region
    $region54: #{birnn_forward.1} parent=1 // pred_check
      _
    $region55: #{birnn_forward.1} parent=1 // pred_check_branch
      %1480 = sbr.rel (0) target = $region57
    $region56: #{birnn_forward.1} parent=1 // pred_region
      %s1482 = ssub.s32 32, 32
      %1483 = vsyncadd [#allocation4], %s1482
      %s1485 = sshll.u32 [#allocation10], 4
      %s1486 = int_to_ptr.vmem [resolvable:$true] %s1485
      %1488 = dma.vmem_to_hbm [thread:$0]  %s1486, 32, %s9, [#allocation4]
    $region57: #{birnn_forward.1} parent=1 // pred_fallthru
      _
    // Predicated region
    $region58: #{birnn_forward.1} parent=1 // pred_check
      _
    $region59: #{birnn_forward.1} parent=1 // pred_check_branch
      %1490 = sbr.rel (0) target = $region61
    $region60: #{birnn_forward.1} parent=1 // pred_region
      %1491 = dma.done [#allocation4], 32
    $region61: #{birnn_forward.1} parent=1 // pred_fallthru
      _
    %1492 = vsyncpa [#allocation3], 1
    %1493 = vsyncpa [#allocation6], 1
    %1494 = vsyncpa [#allocation9], 1
    %1495 = vsyncpa [#allocation4], 1

</llo_original>
